<compile_context>
chip_gen: v5e
topology: v5e:2x2
jax: 0.10.0
libtpu: 0.0.40
codegen_flags: <defaults>
</compile_context>

<pallas_src>
import functools

import jax
import jax.numpy as jnp
import numpy as np
from jax.experimental import pallas as pl
from jax.experimental.pallas import tpu as pltpu


# -----------------------------------------------------------------------------
# Pallas kernel: embedding lookup + multi-layer LSTM over the full sequence,
# single invocation. Packed weights use gate order (i, f, o, g) on the 4H axis.
# -----------------------------------------------------------------------------
def _encoder_kernel(n_layers, hid_dim, seq_len, batch_p, vocab_p,
                    ids_ref, emb_ref, w_ref, out_ref, h_out_ref, c_out_ref):
    H, S, Bp, Vp = hid_dim, seq_len, batch_p, vocab_p
    G = 4 * H
    PACK = 2 * G + 8  # rows per layer in the packed weight slab (bias block padded to 8)

    # ---- Embedding lookup as a one-hot MXU matmul (no dynamic-gather op). ----
    ids = ids_ref[...]                                                # (S*Bp, 1) i32
    vocab_iota = jax.lax.broadcasted_iota(jnp.int32, (S * Bp, Vp), 1)
    onehot = (vocab_iota == ids).astype(jnp.float32)                  # (S*Bp, Vp)
    # dropout: eval-mode identity.
    x = jnp.dot(onehot, emb_ref[...],
                preferred_element_type=jnp.float32)                   # (S*Bp, G); lanes >= E are exactly 0

    # Hoisted lane mask: sigmoid on (i, f, o) lanes [0, 3H), tanh on g lanes.
    lane = jax.lax.broadcasted_iota(jnp.int32, (Bp, G), 1)
    sig_mask = lane < 3 * H

    for l in range(n_layers):                         # static layer loop
        base = l * PACK
        # Hoisted weight loads (outside the time loop); all slice starts are
        # multiples of 8 sublanes.
        w_ih = w_ref[base:base + G, :]                # (G, G); rows >= in_dim are 0
        w_hh = w_ref[base + G:base + 2 * G, :]        # (G, G); rows >= H are 0
        b = w_ref[base + 2 * G:base + 2 * G + 1, :]   # (1, G)  (= b_ih + b_hh)

        if l > 0:
            x = out_ref[...]                          # previous layer's h (wide), (S*Bp, G)

        # Input projection for ALL timesteps: one MXU matmul per layer.
        xp = jnp.dot(x, w_ih, preferred_element_type=jnp.float32) + b  # (S*Bp, G)

        h = jnp.zeros((Bp, G), jnp.float32)           # only lanes [0,H) meaningful
        c = jnp.zeros((Bp, G), jnp.float32)

        for t in range(S):                            # static unrolled recurrence (short)
            gates = xp[t * Bp:(t + 1) * Bp, :] + jnp.dot(
                h, w_hh, preferred_element_type=jnp.float32)            # (Bp, G)
            # Full-vreg nonlinearity: one sigmoid, one tanh, one select.
            act = jnp.where(sig_mask, jax.nn.sigmoid(gates), jnp.tanh(gates))
            i_g = act                                     # lanes [0,H): sigmoid(i)
            f_g = pltpu.roll(act, shift=3 * H, axis=1)    # lanes [0,H): sigmoid(f)
            o_g = pltpu.roll(act, shift=2 * H, axis=1)    # lanes [0,H): sigmoid(o)
            g_g = pltpu.roll(act, shift=H, axis=1)        # lanes [0,H): tanh(g)
            c = f_g * c + i_g * g_g                       # junk lanes bounded, never used
            h = o_g * jnp.tanh(c)
            out_ref[pl.ds(t * Bp, Bp), :] = h             # also next layer's input buffer

        h_out_ref[pl.ds(l * Bp, Bp), :] = h
        c_out_ref[pl.ds(l * Bp, Bp), :] = c


# -----------------------------------------------------------------------------
# One-time parameter packing (init-time, NOT per forward call):
#   gate permutation (i,f,g,o)->(i,f,o,g), zero-padding to (4H,4H), and
#   concatenation of all layers into a single contiguous weight slab.
# -----------------------------------------------------------------------------
def pack_encoder_params(emb_table, lstm_params, hid_dim):
    H = hid_dim
    G = 4 * H
    V, E = emb_table.shape
    Vp = ((V + 7) // 8) * 8

    emb_pad = jnp.zeros((Vp, G), jnp.float32).at[:V, :E].set(
        emb_table.astype(jnp.float32))

    def permute_gates(w):  # PyTorch (i,f,g,o) -> kernel (i,f,o,g)
        return jnp.concatenate(
            [w[:, 0 * H:1 * H], w[:, 1 * H:2 * H],
             w[:, 3 * H:4 * H], w[:, 2 * H:3 * H]], axis=1)

    blocks = []
    for (w_ih, w_hh, b) in lstm_params:
        in_dim = w_ih.shape[0]
        w_ih_p = jnp.zeros((G, G), jnp.float32).at[:in_dim, :].set(permute_gates(w_ih))
        w_hh_p = jnp.zeros((G, G), jnp.float32).at[:H, :].set(permute_gates(w_hh))
        b_blk = jnp.zeros((8, G), jnp.float32).at[0:1, :].set(permute_gates(b))
        blocks += [w_ih_p, w_hh_p, b_blk]
    w_pack = jnp.concatenate(blocks, axis=0)   # (L*(8H+8), 4H)
    return emb_pad, w_pack


# -----------------------------------------------------------------------------
# Encoder forward: tiny id pad/reshape + single pallas_call + output slicing.
# -----------------------------------------------------------------------------
@functools.partial(jax.jit, static_argnums=(3,))
def encoder_forward(src, emb_pad, w_pack, hid_dim):
    S, B = src.shape
    H = hid_dim
    G = 4 * H
    PACK = 2 * G + 8
    L = w_pack.shape[0] // PACK
    Vp = emb_pad.shape[0]
    Bp = ((B + 7) // 8) * 8                      # pad batch to f32 sublane tile

    src_p = jnp.pad(src, ((0, 0), (0, Bp - B))) if Bp != B else src
    ids = src_p.reshape(S * Bp, 1).astype(jnp.int32)

    kernel = functools.partial(_encoder_kernel, L, H, S, Bp, Vp)

    # Single invocation (no grid): every operand is a whole-array VMEM block,
    # DMA'd exactly once; footprint ~0.4 MB (see VMEM ceiling note above).
    out, h_out, c_out = pl.pallas_call(
        kernel,
        out_shape=(
            jax.ShapeDtypeStruct((S * Bp, G), jnp.float32),   # sequence outputs (wide)
            jax.ShapeDtypeStruct((L * Bp, G), jnp.float32),   # final hidden (wide)
            jax.ShapeDtypeStruct((L * Bp, G), jnp.float32),   # final cell (wide)
        ),
    )(ids, emb_pad, w_pack)

    outputs = out.reshape(S, Bp, G)[:, :B, :H]
    hidden = h_out.reshape(L, Bp, G)[:, :B, :H]
    cell = c_out.reshape(L, Bp, G)[:, :B, :H]
    return outputs, hidden, cell


# -----------------------------------------------------------------------------
# Pure-JAX reference (original i,f,g,o gate order, explicit gather).
# -----------------------------------------------------------------------------
def encoder_reference(src, emb_table, lstm_params, hid_dim):
    embedded = jnp.take(emb_table, src, axis=0).astype(jnp.float32)
    S, B, _ = embedded.shape
    L = len(lstm_params)
    H = hid_dim

    def step(carry, x_t):
        h_all, c_all = carry
        new_h, new_c = [], []
        inp = x_t
        for l, (w_ih, w_hh, b) in enumerate(lstm_params):
            gates = inp @ w_ih + h_all[l] @ w_hh + b
            i = jax.nn.sigmoid(gates[:, 0 * H:1 * H])
            f = jax.nn.sigmoid(gates[:, 1 * H:2 * H])
            g = jnp.tanh(gates[:, 2 * H:3 * H])
            o = jax.nn.sigmoid(gates[:, 3 * H:4 * H])
            c = f * c_all[l] + i * g
            h = o * jnp.tanh(c)
            new_h.append(h)
            new_c.append(c)
            inp = h
        return (jnp.stack(new_h), jnp.stack(new_c)), inp

    h0 = jnp.zeros((L, B, H), jnp.float32)
    c0 = jnp.zeros((L, B, H), jnp.float32)
    (hid, cell), outs = jax.lax.scan(step, (h0, c0), embedded)
    return outs, hid, cell


# -----------------------------------------------------------------------------
# Deterministic parameter init (PyTorch-like). Gate order (i, f, g, o).
# -----------------------------------------------------------------------------
def init_params(key, input_dim, emb_dim, hid_dim, n_layers):
    keys = jax.random.split(key, 1 + 4 * n_layers)
    emb_table = jax.random.normal(keys[0], (input_dim, emb_dim), jnp.float32)

    k = 1.0 / np.sqrt(hid_dim)
    params = []
    for l in range(n_layers):
        in_dim = emb_dim if l == 0 else hid_dim
        kw = keys[1 + 4 * l: 1 + 4 * (l + 1)]
        w_ih = jax.random.uniform(kw[0], (in_dim, 4 * hid_dim), jnp.float32, -k, k)
        w_hh = jax.random.uniform(kw[1], (hid_dim, 4 * hid_dim), jnp.float32, -k, k)
        b_ih = jax.random.uniform(kw[2], (4 * hid_dim,), jnp.float32, -k, k)
        b_hh = jax.random.uniform(kw[3], (4 * hid_dim,), jnp.float32, -k, k)
        b = (b_ih + b_hh).reshape(1, 4 * hid_dim)
        params.append((w_ih, w_hh, b))
    return emb_table, params


if __name__ == "__main__":
    # Encoder(input_dim=50, emb_dim=16, hid_dim=32, n_layers=2, dropout=0.5)
    INPUT_DIM, EMB_DIM, HID_DIM, N_LAYERS = 50, 16, 32, 2
    SEQ_LEN, BATCH = 8, 4

    key = jax.random.PRNGKey(0)
    k_src, k_params = jax.random.split(key)
    emb_table, lstm_params = init_params(k_params, INPUT_DIM, EMB_DIM,
                                         HID_DIM, N_LAYERS)
    src = jax.random.randint(k_src, (SEQ_LEN, BATCH), 0, INPUT_DIM,
                             dtype=jnp.int32)

    # One-time packing (gate permutation + padding + concat) — NOT per call.
    emb_pad, w_pack = pack_encoder_params(emb_table, lstm_params, HID_DIM)
    emb_pad = jax.device_put(emb_pad)
    w_pack = jax.device_put(w_pack)

    outputs, hidden, cell = encoder_forward(src, emb_pad, w_pack, HID_DIM)
    jax.block_until_ready((outputs, hidden, cell))

    ref_out, ref_hid, ref_cell = encoder_reference(src, emb_table, lstm_params,
                                                   HID_DIM)
    np.testing.assert_allclose(np.asarray(outputs), np.asarray(ref_out),
                               rtol=1e-3, atol=1e-4)
    np.testing.assert_allclose(np.asarray(hidden), np.asarray(ref_hid),
                               rtol=1e-3, atol=1e-4)
    np.testing.assert_allclose(np.asarray(cell), np.asarray(ref_cell),
                               rtol=1e-3, atol=1e-4)

    assert outputs.shape == (SEQ_LEN, BATCH, HID_DIM)
    assert hidden.shape == (N_LAYERS, BATCH, HID_DIM)
    assert cell.shape == (N_LAYERS, BATCH, HID_DIM)
    print("KERNEL_OK")
</pallas_src>

<mosaic_0001>
module attributes {stable_mosaic.version = 11 : i64} {
  func.func @_encoder_kernel(%arg0: memref<64x1xi32, #tpu.memory_space<vmem>>, %arg1: memref<56x128xf32, #tpu.memory_space<vmem>>, %arg2: memref<528x128xf32, #tpu.memory_space<vmem>>, %arg3: memref<64x128xf32, #tpu.memory_space<vmem>>, %arg4: memref<16x128xf32, #tpu.memory_space<vmem>>, %arg5: memref<16x128xf32, #tpu.memory_space<vmem>>) attributes {dimension_semantics = [], scalar_prefetch = 0 : i64, scratch_operands = 0 : i64, tpu.core_type = #tpu.core_type<tc>} {
    %c0 = arith.constant 0 : index
    %c0_0 = arith.constant 0 : index
    %0 = vector.load %arg0[%c0, %c0_0] : memref<64x1xi32, #tpu.memory_space<vmem>>, vector<64x1xi32>
    %1 = tpu.iota {dimensions = array<i32: 1>} : vector<64x56xi32>
    %2 = vector.broadcast %0 : vector<64x1xi32> to vector<64x56xi32>
    %3 = arith.cmpi eq, %1, %2 : vector<64x56xi32>
    %4 = arith.extui %3 : vector<64x56xi1> to vector<64x56xi32>
    %5 = arith.sitofp %4 : vector<64x56xi32> to vector<64x56xf32>
    %c0_1 = arith.constant 0 : index
    %c0_2 = arith.constant 0 : index
    %6 = vector.load %arg1[%c0_1, %c0_2] : memref<56x128xf32, #tpu.memory_space<vmem>>, vector<56x128xf32>
    %cst = arith.constant dense<0.000000e+00> : vector<64x128xf32>
    %7 = tpu.matmul %5, %6, %cst {dimension_numbers = #tpu.dot_dimension_numbers<[1], [0], [0], [1], [0, 0, 1, 1], [], []>} : vector<64x56xf32>, vector<56x128xf32>, vector<64x128xf32> -> vector<64x128xf32>
    %8 = tpu.iota {dimensions = array<i32: 1>} : vector<8x128xi32>
    %c96_i32 = arith.constant 96 : i32
    %9 = vector.broadcast %c96_i32 : i32 to vector<8x128xi32>
    %10 = arith.cmpi slt, %8, %9 : vector<8x128xi32>
    %c0_3 = arith.constant 0 : index
    %c0_4 = arith.constant 0 : index
    %11 = vector.load %arg2[%c0_3, %c0_4] : memref<528x128xf32, #tpu.memory_space<vmem>>, vector<128x128xf32>
    %c128 = arith.constant 128 : index
    %c0_5 = arith.constant 0 : index
    %12 = vector.load %arg2[%c128, %c0_5] : memref<528x128xf32, #tpu.memory_space<vmem>>, vector<128x128xf32>
    %c256 = arith.constant 256 : index
    %c0_6 = arith.constant 0 : index
    %13 = vector.load %arg2[%c256, %c0_6] : memref<528x128xf32, #tpu.memory_space<vmem>>, vector<1x128xf32>
    %cst_7 = arith.constant dense<0.000000e+00> : vector<64x128xf32>
    %14 = tpu.matmul %7, %11, %cst_7 {dimension_numbers = #tpu.dot_dimension_numbers<[1], [0], [0], [1], [0, 0, 1, 1], [], []>} : vector<64x128xf32>, vector<128x128xf32>, vector<64x128xf32> -> vector<64x128xf32>
    %15 = vector.broadcast %13 : vector<1x128xf32> to vector<64x128xf32>
    %16 = arith.addf %14, %15 : vector<64x128xf32>
    %cst_8 = arith.constant 0.000000e+00 : f32
    %17 = vector.broadcast %cst_8 : f32 to vector<8x128xf32>
    %cst_9 = arith.constant 0.000000e+00 : f32
    %18 = vector.broadcast %cst_9 : f32 to vector<8x128xf32>
    %19 = vector.extract_strided_slice %16 {offsets = [0, 0], sizes = [8, 128], strides = [1, 1]} : vector<64x128xf32> to vector<8x128xf32>
    %cst_10 = arith.constant dense<0.000000e+00> : vector<8x128xf32>
    %20 = tpu.matmul %17, %12, %cst_10 {dimension_numbers = #tpu.dot_dimension_numbers<[1], [0], [0], [1], [0, 0, 1, 1], [], []>} : vector<8x128xf32>, vector<128x128xf32>, vector<8x128xf32> -> vector<8x128xf32>
    %21 = arith.addf %19, %20 : vector<8x128xf32>
    %22 = arith.negf %21 : vector<8x128xf32>
    %23 = math.exp %22 : vector<8x128xf32>
    %cst_11 = arith.constant 1.000000e+00 : f32
    %24 = vector.broadcast %cst_11 : f32 to vector<8x128xf32>
    %25 = arith.addf %24, %23 : vector<8x128xf32>
    %26 = arith.divf %24, %25 : vector<8x128xf32>
    %27 = math.tanh %21 : vector<8x128xf32>
    %28 = arith.select %10, %26, %27 : vector<8x128xi1>, vector<8x128xf32>
    %c96_i32_12 = arith.constant 96 : i32
    %29 = tpu.dynamic_rotate %28 by %c96_i32_12 dim 1 : vector<8x128xf32>, i32 -> vector<8x128xf32>
    %c64_i32 = arith.constant 64 : i32
    %30 = tpu.dynamic_rotate %28 by %c64_i32 dim 1 : vector<8x128xf32>, i32 -> vector<8x128xf32>
    %c32_i32 = arith.constant 32 : i32
    %31 = tpu.dynamic_rotate %28 by %c32_i32 dim 1 : vector<8x128xf32>, i32 -> vector<8x128xf32>
    %32 = arith.mulf %29, %18 : vector<8x128xf32>
    %33 = arith.mulf %28, %31 : vector<8x128xf32>
    %34 = arith.addf %32, %33 : vector<8x128xf32>
    %35 = math.tanh %34 : vector<8x128xf32>
    %36 = arith.mulf %30, %35 : vector<8x128xf32>
    %c0_13 = arith.constant 0 : index
    %c0_14 = arith.constant 0 : index
    %37 = vector.load %arg3[%c0_13, %c0_14] : memref<64x128xf32, #tpu.memory_space<vmem>>, vector<8x128xf32>
    tpu.vector_store %arg3[%c0_13, %c0_14], %36 {strides = array<i32>} : memref<64x128xf32, #tpu.memory_space<vmem>>, vector<8x128xf32>,
    %38 = vector.extract_strided_slice %16 {offsets = [8, 0], sizes = [8, 128], strides = [1, 1]} : vector<64x128xf32> to vector<8x128xf32>
    %cst_15 = arith.constant dense<0.000000e+00> : vector<8x128xf32>
    %39 = tpu.matmul %36, %12, %cst_15 {dimension_numbers = #tpu.dot_dimension_numbers<[1], [0], [0], [1], [0, 0, 1, 1], [], []>} : vector<8x128xf32>, vector<128x128xf32>, vector<8x128xf32> -> vector<8x128xf32>
    %40 = arith.addf %38, %39 : vector<8x128xf32>
    %41 = arith.negf %40 : vector<8x128xf32>
    %42 = math.exp %41 : vector<8x128xf32>
    %cst_16 = arith.constant 1.000000e+00 : f32
    %43 = vector.broadcast %cst_16 : f32 to vector<8x128xf32>
    %44 = arith.addf %43, %42 : vector<8x128xf32>
    %45 = arith.divf %43, %44 : vector<8x128xf32>
    %46 = math.tanh %40 : vector<8x128xf32>
    %47 = arith.select %10, %45, %46 : vector<8x128xi1>, vector<8x128xf32>
    %c96_i32_17 = arith.constant 96 : i32
    %48 = tpu.dynamic_rotate %47 by %c96_i32_17 dim 1 : vector<8x128xf32>, i32 -> vector<8x128xf32>
    %c64_i32_18 = arith.constant 64 : i32
    %49 = tpu.dynamic_rotate %47 by %c64_i32_18 dim 1 : vector<8x128xf32>, i32 -> vector<8x128xf32>
    %c32_i32_19 = arith.constant 32 : i32
    %50 = tpu.dynamic_rotate %47 by %c32_i32_19 dim 1 : vector<8x128xf32>, i32 -> vector<8x128xf32>
    %51 = arith.mulf %48, %34 : vector<8x128xf32>
    %52 = arith.mulf %47, %50 : vector<8x128xf32>
    %53 = arith.addf %51, %52 : vector<8x128xf32>
    %54 = math.tanh %53 : vector<8x128xf32>
    %55 = arith.mulf %49, %54 : vector<8x128xf32>
    %c8 = arith.constant 8 : index
    %c0_20 = arith.constant 0 : index
    %56 = vector.load %arg3[%c8, %c0_20] : memref<64x128xf32, #tpu.memory_space<vmem>>, vector<8x128xf32>
    tpu.vector_store %arg3[%c8, %c0_20], %55 {strides = array<i32>} : memref<64x128xf32, #tpu.memory_space<vmem>>, vector<8x128xf32>,
    %57 = vector.extract_strided_slice %16 {offsets = [16, 0], sizes = [8, 128], strides = [1, 1]} : vector<64x128xf32> to vector<8x128xf32>
    %cst_21 = arith.constant dense<0.000000e+00> : vector<8x128xf32>
    %58 = tpu.matmul %55, %12, %cst_21 {dimension_numbers = #tpu.dot_dimension_numbers<[1], [0], [0], [1], [0, 0, 1, 1], [], []>} : vector<8x128xf32>, vector<128x128xf32>, vector<8x128xf32> -> vector<8x128xf32>
    %59 = arith.addf %57, %58 : vector<8x128xf32>
    %60 = arith.negf %59 : vector<8x128xf32>
    %61 = math.exp %60 : vector<8x128xf32>
    %cst_22 = arith.constant 1.000000e+00 : f32
    %62 = vector.broadcast %cst_22 : f32 to vector<8x128xf32>
    %63 = arith.addf %62, %61 : vector<8x128xf32>
    %64 = arith.divf %62, %63 : vector<8x128xf32>
    %65 = math.tanh %59 : vector<8x128xf32>
    %66 = arith.select %10, %64, %65 : vector<8x128xi1>, vector<8x128xf32>
    %c96_i32_23 = arith.constant 96 : i32
    %67 = tpu.dynamic_rotate %66 by %c96_i32_23 dim 1 : vector<8x128xf32>, i32 -> vector<8x128xf32>
    %c64_i32_24 = arith.constant 64 : i32
    %68 = tpu.dynamic_rotate %66 by %c64_i32_24 dim 1 : vector<8x128xf32>, i32 -> vector<8x128xf32>
    %c32_i32_25 = arith.constant 32 : i32
    %69 = tpu.dynamic_rotate %66 by %c32_i32_25 dim 1 : vector<8x128xf32>, i32 -> vector<8x128xf32>
    %70 = arith.mulf %67, %53 : vector<8x128xf32>
    %71 = arith.mulf %66, %69 : vector<8x128xf32>
    %72 = arith.addf %70, %71 : vector<8x128xf32>
    %73 = math.tanh %72 : vector<8x128xf32>
    %74 = arith.mulf %68, %73 : vector<8x128xf32>
    %c16 = arith.constant 16 : index
    %c0_26 = arith.constant 0 : index
    %75 = vector.load %arg3[%c16, %c0_26] : memref<64x128xf32, #tpu.memory_space<vmem>>, vector<8x128xf32>
    tpu.vector_store %arg3[%c16, %c0_26], %74 {strides = array<i32>} : memref<64x128xf32, #tpu.memory_space<vmem>>, vector<8x128xf32>,
    %76 = vector.extract_strided_slice %16 {offsets = [24, 0], sizes = [8, 128], strides = [1, 1]} : vector<64x128xf32> to vector<8x128xf32>
    %cst_27 = arith.constant dense<0.000000e+00> : vector<8x128xf32>
    %77 = tpu.matmul %74, %12, %cst_27 {dimension_numbers = #tpu.dot_dimension_numbers<[1], [0], [0], [1], [0, 0, 1, 1], [], []>} : vector<8x128xf32>, vector<128x128xf32>, vector<8x128xf32> -> vector<8x128xf32>
    %78 = arith.addf %76, %77 : vector<8x128xf32>
    %79 = arith.negf %78 : vector<8x128xf32>
    %80 = math.exp %79 : vector<8x128xf32>
    %cst_28 = arith.constant 1.000000e+00 : f32
    %81 = vector.broadcast %cst_28 : f32 to vector<8x128xf32>
    %82 = arith.addf %81, %80 : vector<8x128xf32>
    %83 = arith.divf %81, %82 : vector<8x128xf32>
    %84 = math.tanh %78 : vector<8x128xf32>
    %85 = arith.select %10, %83, %84 : vector<8x128xi1>, vector<8x128xf32>
    %c96_i32_29 = arith.constant 96 : i32
    %86 = tpu.dynamic_rotate %85 by %c96_i32_29 dim 1 : vector<8x128xf32>, i32 -> vector<8x128xf32>
    %c64_i32_30 = arith.constant 64 : i32
    %87 = tpu.dynamic_rotate %85 by %c64_i32_30 dim 1 : vector<8x128xf32>, i32 -> vector<8x128xf32>
    %c32_i32_31 = arith.constant 32 : i32
    %88 = tpu.dynamic_rotate %85 by %c32_i32_31 dim 1 : vector<8x128xf32>, i32 -> vector<8x128xf32>
    %89 = arith.mulf %86, %72 : vector<8x128xf32>
    %90 = arith.mulf %85, %88 : vector<8x128xf32>
    %91 = arith.addf %89, %90 : vector<8x128xf32>
    %92 = math.tanh %91 : vector<8x128xf32>
    %93 = arith.mulf %87, %92 : vector<8x128xf32>
    %c24 = arith.constant 24 : index
    %c0_32 = arith.constant 0 : index
    %94 = vector.load %arg3[%c24, %c0_32] : memref<64x128xf32, #tpu.memory_space<vmem>>, vector<8x128xf32>
    tpu.vector_store %arg3[%c24, %c0_32], %93 {strides = array<i32>} : memref<64x128xf32, #tpu.memory_space<vmem>>, vector<8x128xf32>,
    %95 = vector.extract_strided_slice %16 {offsets = [32, 0], sizes = [8, 128], strides = [1, 1]} : vector<64x128xf32> to vector<8x128xf32>
    %cst_33 = arith.constant dense<0.000000e+00> : vector<8x128xf32>
    %96 = tpu.matmul %93, %12, %cst_33 {dimension_numbers = #tpu.dot_dimension_numbers<[1], [0], [0], [1], [0, 0, 1, 1], [], []>} : vector<8x128xf32>, vector<128x128xf32>, vector<8x128xf32> -> vector<8x128xf32>
    %97 = arith.addf %95, %96 : vector<8x128xf32>
    %98 = arith.negf %97 : vector<8x128xf32>
    %99 = math.exp %98 : vector<8x128xf32>
    %cst_34 = arith.constant 1.000000e+00 : f32
    %100 = vector.broadcast %cst_34 : f32 to vector<8x128xf32>
    %101 = arith.addf %100, %99 : vector<8x128xf32>
    %102 = arith.divf %100, %101 : vector<8x128xf32>
    %103 = math.tanh %97 : vector<8x128xf32>
    %104 = arith.select %10, %102, %103 : vector<8x128xi1>, vector<8x128xf32>
    %c96_i32_35 = arith.constant 96 : i32
    %105 = tpu.dynamic_rotate %104 by %c96_i32_35 dim 1 : vector<8x128xf32>, i32 -> vector<8x128xf32>
    %c64_i32_36 = arith.constant 64 : i32
    %106 = tpu.dynamic_rotate %104 by %c64_i32_36 dim 1 : vector<8x128xf32>, i32 -> vector<8x128xf32>
    %c32_i32_37 = arith.constant 32 : i32
    %107 = tpu.dynamic_rotate %104 by %c32_i32_37 dim 1 : vector<8x128xf32>, i32 -> vector<8x128xf32>
    %108 = arith.mulf %105, %91 : vector<8x128xf32>
    %109 = arith.mulf %104, %107 : vector<8x128xf32>
    %110 = arith.addf %108, %109 : vector<8x128xf32>
    %111 = math.tanh %110 : vector<8x128xf32>
    %112 = arith.mulf %106, %111 : vector<8x128xf32>
    %c32 = arith.constant 32 : index
    %c0_38 = arith.constant 0 : index
    %113 = vector.load %arg3[%c32, %c0_38] : memref<64x128xf32, #tpu.memory_space<vmem>>, vector<8x128xf32>
    tpu.vector_store %arg3[%c32, %c0_38], %112 {strides = array<i32>} : memref<64x128xf32, #tpu.memory_space<vmem>>, vector<8x128xf32>,
    %114 = vector.extract_strided_slice %16 {offsets = [40, 0], sizes = [8, 128], strides = [1, 1]} : vector<64x128xf32> to vector<8x128xf32>
    %cst_39 = arith.constant dense<0.000000e+00> : vector<8x128xf32>
    %115 = tpu.matmul %112, %12, %cst_39 {dimension_numbers = #tpu.dot_dimension_numbers<[1], [0], [0], [1], [0, 0, 1, 1], [], []>} : vector<8x128xf32>, vector<128x128xf32>, vector<8x128xf32> -> vector<8x128xf32>
    %116 = arith.addf %114, %115 : vector<8x128xf32>
    %117 = arith.negf %116 : vector<8x128xf32>
    %118 = math.exp %117 : vector<8x128xf32>
    %cst_40 = arith.constant 1.000000e+00 : f32
    %119 = vector.broadcast %cst_40 : f32 to vector<8x128xf32>
    %120 = arith.addf %119, %118 : vector<8x128xf32>
    %121 = arith.divf %119, %120 : vector<8x128xf32>
    %122 = math.tanh %116 : vector<8x128xf32>
    %123 = arith.select %10, %121, %122 : vector<8x128xi1>, vector<8x128xf32>
    %c96_i32_41 = arith.constant 96 : i32
    %124 = tpu.dynamic_rotate %123 by %c96_i32_41 dim 1 : vector<8x128xf32>, i32 -> vector<8x128xf32>
    %c64_i32_42 = arith.constant 64 : i32
    %125 = tpu.dynamic_rotate %123 by %c64_i32_42 dim 1 : vector<8x128xf32>, i32 -> vector<8x128xf32>
    %c32_i32_43 = arith.constant 32 : i32
    %126 = tpu.dynamic_rotate %123 by %c32_i32_43 dim 1 : vector<8x128xf32>, i32 -> vector<8x128xf32>
    %127 = arith.mulf %124, %110 : vector<8x128xf32>
    %128 = arith.mulf %123, %126 : vector<8x128xf32>
    %129 = arith.addf %127, %128 : vector<8x128xf32>
    %130 = math.tanh %129 : vector<8x128xf32>
    %131 = arith.mulf %125, %130 : vector<8x128xf32>
    %c40 = arith.constant 40 : index
    %c0_44 = arith.constant 0 : index
    %132 = vector.load %arg3[%c40, %c0_44] : memref<64x128xf32, #tpu.memory_space<vmem>>, vector<8x128xf32>
    tpu.vector_store %arg3[%c40, %c0_44], %131 {strides = array<i32>} : memref<64x128xf32, #tpu.memory_space<vmem>>, vector<8x128xf32>,
    %133 = vector.extract_strided_slice %16 {offsets = [48, 0], sizes = [8, 128], strides = [1, 1]} : vector<64x128xf32> to vector<8x128xf32>
    %cst_45 = arith.constant dense<0.000000e+00> : vector<8x128xf32>
    %134 = tpu.matmul %131, %12, %cst_45 {dimension_numbers = #tpu.dot_dimension_numbers<[1], [0], [0], [1], [0, 0, 1, 1], [], []>} : vector<8x128xf32>, vector<128x128xf32>, vector<8x128xf32> -> vector<8x128xf32>
    %135 = arith.addf %133, %134 : vector<8x128xf32>
    %136 = arith.negf %135 : vector<8x128xf32>
    %137 = math.exp %136 : vector<8x128xf32>
    %cst_46 = arith.constant 1.000000e+00 : f32
    %138 = vector.broadcast %cst_46 : f32 to vector<8x128xf32>
    %139 = arith.addf %138, %137 : vector<8x128xf32>
    %140 = arith.divf %138, %139 : vector<8x128xf32>
    %141 = math.tanh %135 : vector<8x128xf32>
    %142 = arith.select %10, %140, %141 : vector<8x128xi1>, vector<8x128xf32>
    %c96_i32_47 = arith.constant 96 : i32
    %143 = tpu.dynamic_rotate %142 by %c96_i32_47 dim 1 : vector<8x128xf32>, i32 -> vector<8x128xf32>
    %c64_i32_48 = arith.constant 64 : i32
    %144 = tpu.dynamic_rotate %142 by %c64_i32_48 dim 1 : vector<8x128xf32>, i32 -> vector<8x128xf32>
    %c32_i32_49 = arith.constant 32 : i32
    %145 = tpu.dynamic_rotate %142 by %c32_i32_49 dim 1 : vector<8x128xf32>, i32 -> vector<8x128xf32>
    %146 = arith.mulf %143, %129 : vector<8x128xf32>
    %147 = arith.mulf %142, %145 : vector<8x128xf32>
    %148 = arith.addf %146, %147 : vector<8x128xf32>
    %149 = math.tanh %148 : vector<8x128xf32>
    %150 = arith.mulf %144, %149 : vector<8x128xf32>
    %c48 = arith.constant 48 : index
    %c0_50 = arith.constant 0 : index
    %151 = vector.load %arg3[%c48, %c0_50] : memref<64x128xf32, #tpu.memory_space<vmem>>, vector<8x128xf32>
    tpu.vector_store %arg3[%c48, %c0_50], %150 {strides = array<i32>} : memref<64x128xf32, #tpu.memory_space<vmem>>, vector<8x128xf32>,
    %152 = vector.extract_strided_slice %16 {offsets = [56, 0], sizes = [8, 128], strides = [1, 1]} : vector<64x128xf32> to vector<8x128xf32>
    %cst_51 = arith.constant dense<0.000000e+00> : vector<8x128xf32>
    %153 = tpu.matmul %150, %12, %cst_51 {dimension_numbers = #tpu.dot_dimension_numbers<[1], [0], [0], [1], [0, 0, 1, 1], [], []>} : vector<8x128xf32>, vector<128x128xf32>, vector<8x128xf32> -> vector<8x128xf32>
    %154 = arith.addf %152, %153 : vector<8x128xf32>
    %155 = arith.negf %154 : vector<8x128xf32>
    %156 = math.exp %155 : vector<8x128xf32>
    %cst_52 = arith.constant 1.000000e+00 : f32
    %157 = vector.broadcast %cst_52 : f32 to vector<8x128xf32>
    %158 = arith.addf %157, %156 : vector<8x128xf32>
    %159 = arith.divf %157, %158 : vector<8x128xf32>
    %160 = math.tanh %154 : vector<8x128xf32>
    %161 = arith.select %10, %159, %160 : vector<8x128xi1>, vector<8x128xf32>
    %c96_i32_53 = arith.constant 96 : i32
    %162 = tpu.dynamic_rotate %161 by %c96_i32_53 dim 1 : vector<8x128xf32>, i32 -> vector<8x128xf32>
    %c64_i32_54 = arith.constant 64 : i32
    %163 = tpu.dynamic_rotate %161 by %c64_i32_54 dim 1 : vector<8x128xf32>, i32 -> vector<8x128xf32>
    %c32_i32_55 = arith.constant 32 : i32
    %164 = tpu.dynamic_rotate %161 by %c32_i32_55 dim 1 : vector<8x128xf32>, i32 -> vector<8x128xf32>
    %165 = arith.mulf %162, %148 : vector<8x128xf32>
    %166 = arith.mulf %161, %164 : vector<8x128xf32>
    %167 = arith.addf %165, %166 : vector<8x128xf32>
    %168 = math.tanh %167 : vector<8x128xf32>
    %169 = arith.mulf %163, %168 : vector<8x128xf32>
    %c56 = arith.constant 56 : index
    %c0_56 = arith.constant 0 : index
    %170 = vector.load %arg3[%c56, %c0_56] : memref<64x128xf32, #tpu.memory_space<vmem>>, vector<8x128xf32>
    tpu.vector_store %arg3[%c56, %c0_56], %169 {strides = array<i32>} : memref<64x128xf32, #tpu.memory_space<vmem>>, vector<8x128xf32>,
    %c0_57 = arith.constant 0 : index
    %c0_58 = arith.constant 0 : index
    %171 = vector.load %arg4[%c0_57, %c0_58] : memref<16x128xf32, #tpu.memory_space<vmem>>, vector<8x128xf32>
    tpu.vector_store %arg4[%c0_57, %c0_58], %169 {strides = array<i32>} : memref<16x128xf32, #tpu.memory_space<vmem>>, vector<8x128xf32>,
    %c0_59 = arith.constant 0 : index
    %c0_60 = arith.constant 0 : index
    %172 = vector.load %arg5[%c0_59, %c0_60] : memref<16x128xf32, #tpu.memory_space<vmem>>, vector<8x128xf32>
    tpu.vector_store %arg5[%c0_59, %c0_60], %167 {strides = array<i32>} : memref<16x128xf32, #tpu.memory_space<vmem>>, vector<8x128xf32>,
    %c264 = arith.constant 264 : index
    %c0_61 = arith.constant 0 : index
    %173 = vector.load %arg2[%c264, %c0_61] : memref<528x128xf32, #tpu.memory_space<vmem>>, vector<128x128xf32>
    %c392 = arith.constant 392 : index
    %c0_62 = arith.constant 0 : index
    %174 = vector.load %arg2[%c392, %c0_62] : memref<528x128xf32, #tpu.memory_space<vmem>>, vector<128x128xf32>
    %c520 = arith.constant 520 : index
    %c0_63 = arith.constant 0 : index
    %175 = vector.load %arg2[%c520, %c0_63] : memref<528x128xf32, #tpu.memory_space<vmem>>, vector<1x128xf32>
    %c0_64 = arith.constant 0 : index
    %c0_65 = arith.constant 0 : index
    %176 = vector.load %arg3[%c0_64, %c0_65] : memref<64x128xf32, #tpu.memory_space<vmem>>, vector<64x128xf32>
    %cst_66 = arith.constant dense<0.000000e+00> : vector<64x128xf32>
    %177 = tpu.matmul %176, %173, %cst_66 {dimension_numbers = #tpu.dot_dimension_numbers<[1], [0], [0], [1], [0, 0, 1, 1], [], []>} : vector<64x128xf32>, vector<128x128xf32>, vector<64x128xf32> -> vector<64x128xf32>
    %178 = vector.broadcast %175 : vector<1x128xf32> to vector<64x128xf32>
    %179 = arith.addf %177, %178 : vector<64x128xf32>
    %cst_67 = arith.constant 0.000000e+00 : f32
    %180 = vector.broadcast %cst_67 : f32 to vector<8x128xf32>
    %cst_68 = arith.constant 0.000000e+00 : f32
    %181 = vector.broadcast %cst_68 : f32 to vector<8x128xf32>
    %182 = vector.extract_strided_slice %179 {offsets = [0, 0], sizes = [8, 128], strides = [1, 1]} : vector<64x128xf32> to vector<8x128xf32>
    %cst_69 = arith.constant dense<0.000000e+00> : vector<8x128xf32>
    %183 = tpu.matmul %180, %174, %cst_69 {dimension_numbers = #tpu.dot_dimension_numbers<[1], [0], [0], [1], [0, 0, 1, 1], [], []>} : vector<8x128xf32>, vector<128x128xf32>, vector<8x128xf32> -> vector<8x128xf32>
    %184 = arith.addf %182, %183 : vector<8x128xf32>
    %185 = arith.negf %184 : vector<8x128xf32>
    %186 = math.exp %185 : vector<8x128xf32>
    %cst_70 = arith.constant 1.000000e+00 : f32
    %187 = vector.broadcast %cst_70 : f32 to vector<8x128xf32>
    %188 = arith.addf %187, %186 : vector<8x128xf32>
    %189 = arith.divf %187, %188 : vector<8x128xf32>
    %190 = math.tanh %184 : vector<8x128xf32>
    %191 = arith.select %10, %189, %190 : vector<8x128xi1>, vector<8x128xf32>
    %c96_i32_71 = arith.constant 96 : i32
    %192 = tpu.dynamic_rotate %191 by %c96_i32_71 dim 1 : vector<8x128xf32>, i32 -> vector<8x128xf32>
    %c64_i32_72 = arith.constant 64 : i32
    %193 = tpu.dynamic_rotate %191 by %c64_i32_72 dim 1 : vector<8x128xf32>, i32 -> vector<8x128xf32>
    %c32_i32_73 = arith.constant 32 : i32
    %194 = tpu.dynamic_rotate %191 by %c32_i32_73 dim 1 : vector<8x128xf32>, i32 -> vector<8x128xf32>
    %195 = arith.mulf %192, %181 : vector<8x128xf32>
    %196 = arith.mulf %191, %194 : vector<8x128xf32>
    %197 = arith.addf %195, %196 : vector<8x128xf32>
    %198 = math.tanh %197 : vector<8x128xf32>
    %199 = arith.mulf %193, %198 : vector<8x128xf32>
    %c0_74 = arith.constant 0 : index
    %c0_75 = arith.constant 0 : index
    %200 = vector.load %arg3[%c0_74, %c0_75] : memref<64x128xf32, #tpu.memory_space<vmem>>, vector<8x128xf32>
    tpu.vector_store %arg3[%c0_74, %c0_75], %199 {strides = array<i32>} : memref<64x128xf32, #tpu.memory_space<vmem>>, vector<8x128xf32>,
    %201 = vector.extract_strided_slice %179 {offsets = [8, 0], sizes = [8, 128], strides = [1, 1]} : vector<64x128xf32> to vector<8x128xf32>
    %cst_76 = arith.constant dense<0.000000e+00> : vector<8x128xf32>
    %202 = tpu.matmul %199, %174, %cst_76 {dimension_numbers = #tpu.dot_dimension_numbers<[1], [0], [0], [1], [0, 0, 1, 1], [], []>} : vector<8x128xf32>, vector<128x128xf32>, vector<8x128xf32> -> vector<8x128xf32>
    %203 = arith.addf %201, %202 : vector<8x128xf32>
    %204 = arith.negf %203 : vector<8x128xf32>
    %205 = math.exp %204 : vector<8x128xf32>
    %cst_77 = arith.constant 1.000000e+00 : f32
    %206 = vector.broadcast %cst_77 : f32 to vector<8x128xf32>
    %207 = arith.addf %206, %205 : vector<8x128xf32>
    %208 = arith.divf %206, %207 : vector<8x128xf32>
    %209 = math.tanh %203 : vector<8x128xf32>
    %210 = arith.select %10, %208, %209 : vector<8x128xi1>, vector<8x128xf32>
    %c96_i32_78 = arith.constant 96 : i32
    %211 = tpu.dynamic_rotate %210 by %c96_i32_78 dim 1 : vector<8x128xf32>, i32 -> vector<8x128xf32>
    %c64_i32_79 = arith.constant 64 : i32
    %212 = tpu.dynamic_rotate %210 by %c64_i32_79 dim 1 : vector<8x128xf32>, i32 -> vector<8x128xf32>
    %c32_i32_80 = arith.constant 32 : i32
    %213 = tpu.dynamic_rotate %210 by %c32_i32_80 dim 1 : vector<8x128xf32>, i32 -> vector<8x128xf32>
    %214 = arith.mulf %211, %197 : vector<8x128xf32>
    %215 = arith.mulf %210, %213 : vector<8x128xf32>
    %216 = arith.addf %214, %215 : vector<8x128xf32>
    %217 = math.tanh %216 : vector<8x128xf32>
    %218 = arith.mulf %212, %217 : vector<8x128xf32>
    %c8_81 = arith.constant 8 : index
    %c0_82 = arith.constant 0 : index
    %219 = vector.load %arg3[%c8_81, %c0_82] : memref<64x128xf32, #tpu.memory_space<vmem>>, vector<8x128xf32>
    tpu.vector_store %arg3[%c8_81, %c0_82], %218 {strides = array<i32>} : memref<64x128xf32, #tpu.memory_space<vmem>>, vector<8x128xf32>,
    %220 = vector.extract_strided_slice %179 {offsets = [16, 0], sizes = [8, 128], strides = [1, 1]} : vector<64x128xf32> to vector<8x128xf32>
    %cst_83 = arith.constant dense<0.000000e+00> : vector<8x128xf32>
    %221 = tpu.matmul %218, %174, %cst_83 {dimension_numbers = #tpu.dot_dimension_numbers<[1], [0], [0], [1], [0, 0, 1, 1], [], []>} : vector<8x128xf32>, vector<128x128xf32>, vector<8x128xf32> -> vector<8x128xf32>
    %222 = arith.addf %220, %221 : vector<8x128xf32>
    %223 = arith.negf %222 : vector<8x128xf32>
    %224 = math.exp %223 : vector<8x128xf32>
    %cst_84 = arith.constant 1.000000e+00 : f32
    %225 = vector.broadcast %cst_84 : f32 to vector<8x128xf32>
    %226 = arith.addf %225, %224 : vector<8x128xf32>
    %227 = arith.divf %225, %226 : vector<8x128xf32>
    %228 = math.tanh %222 : vector<8x128xf32>
    %229 = arith.select %10, %227, %228 : vector<8x128xi1>, vector<8x128xf32>
    %c96_i32_85 = arith.constant 96 : i32
    %230 = tpu.dynamic_rotate %229 by %c96_i32_85 dim 1 : vector<8x128xf32>, i32 -> vector<8x128xf32>
    %c64_i32_86 = arith.constant 64 : i32
    %231 = tpu.dynamic_rotate %229 by %c64_i32_86 dim 1 : vector<8x128xf32>, i32 -> vector<8x128xf32>
    %c32_i32_87 = arith.constant 32 : i32
    %232 = tpu.dynamic_rotate %229 by %c32_i32_87 dim 1 : vector<8x128xf32>, i32 -> vector<8x128xf32>
    %233 = arith.mulf %230, %216 : vector<8x128xf32>
    %234 = arith.mulf %229, %232 : vector<8x128xf32>
    %235 = arith.addf %233, %234 : vector<8x128xf32>
    %236 = math.tanh %235 : vector<8x128xf32>
    %237 = arith.mulf %231, %236 : vector<8x128xf32>
    %c16_88 = arith.constant 16 : index
    %c0_89 = arith.constant 0 : index
    %238 = vector.load %arg3[%c16_88, %c0_89] : memref<64x128xf32, #tpu.memory_space<vmem>>, vector<8x128xf32>
    tpu.vector_store %arg3[%c16_88, %c0_89], %237 {strides = array<i32>} : memref<64x128xf32, #tpu.memory_space<vmem>>, vector<8x128xf32>,
    %239 = vector.extract_strided_slice %179 {offsets = [24, 0], sizes = [8, 128], strides = [1, 1]} : vector<64x128xf32> to vector<8x128xf32>
    %cst_90 = arith.constant dense<0.000000e+00> : vector<8x128xf32>
    %240 = tpu.matmul %237, %174, %cst_90 {dimension_numbers = #tpu.dot_dimension_numbers<[1], [0], [0], [1], [0, 0, 1, 1], [], []>} : vector<8x128xf32>, vector<128x128xf32>, vector<8x128xf32> -> vector<8x128xf32>
    %241 = arith.addf %239, %240 : vector<8x128xf32>
    %242 = arith.negf %241 : vector<8x128xf32>
    %243 = math.exp %242 : vector<8x128xf32>
    %cst_91 = arith.constant 1.000000e+00 : f32
    %244 = vector.broadcast %cst_91 : f32 to vector<8x128xf32>
    %245 = arith.addf %244, %243 : vector<8x128xf32>
    %246 = arith.divf %244, %245 : vector<8x128xf32>
    %247 = math.tanh %241 : vector<8x128xf32>
    %248 = arith.select %10, %246, %247 : vector<8x128xi1>, vector<8x128xf32>
    %c96_i32_92 = arith.constant 96 : i32
    %249 = tpu.dynamic_rotate %248 by %c96_i32_92 dim 1 : vector<8x128xf32>, i32 -> vector<8x128xf32>
    %c64_i32_93 = arith.constant 64 : i32
    %250 = tpu.dynamic_rotate %248 by %c64_i32_93 dim 1 : vector<8x128xf32>, i32 -> vector<8x128xf32>
    %c32_i32_94 = arith.constant 32 : i32
    %251 = tpu.dynamic_rotate %248 by %c32_i32_94 dim 1 : vector<8x128xf32>, i32 -> vector<8x128xf32>
    %252 = arith.mulf %249, %235 : vector<8x128xf32>
    %253 = arith.mulf %248, %251 : vector<8x128xf32>
    %254 = arith.addf %252, %253 : vector<8x128xf32>
    %255 = math.tanh %254 : vector<8x128xf32>
    %256 = arith.mulf %250, %255 : vector<8x128xf32>
    %c24_95 = arith.constant 24 : index
    %c0_96 = arith.constant 0 : index
    %257 = vector.load %arg3[%c24_95, %c0_96] : memref<64x128xf32, #tpu.memory_space<vmem>>, vector<8x128xf32>
    tpu.vector_store %arg3[%c24_95, %c0_96], %256 {strides = array<i32>} : memref<64x128xf32, #tpu.memory_space<vmem>>, vector<8x128xf32>,
    %258 = vector.extract_strided_slice %179 {offsets = [32, 0], sizes = [8, 128], strides = [1, 1]} : vector<64x128xf32> to vector<8x128xf32>
    %cst_97 = arith.constant dense<0.000000e+00> : vector<8x128xf32>
    %259 = tpu.matmul %256, %174, %cst_97 {dimension_numbers = #tpu.dot_dimension_numbers<[1], [0], [0], [1], [0, 0, 1, 1], [], []>} : vector<8x128xf32>, vector<128x128xf32>, vector<8x128xf32> -> vector<8x128xf32>
    %260 = arith.addf %258, %259 : vector<8x128xf32>
    %261 = arith.negf %260 : vector<8x128xf32>
    %262 = math.exp %261 : vector<8x128xf32>
    %cst_98 = arith.constant 1.000000e+00 : f32
    %263 = vector.broadcast %cst_98 : f32 to vector<8x128xf32>
    %264 = arith.addf %263, %262 : vector<8x128xf32>
    %265 = arith.divf %263, %264 : vector<8x128xf32>
    %266 = math.tanh %260 : vector<8x128xf32>
    %267 = arith.select %10, %265, %266 : vector<8x128xi1>, vector<8x128xf32>
    %c96_i32_99 = arith.constant 96 : i32
    %268 = tpu.dynamic_rotate %267 by %c96_i32_99 dim 1 : vector<8x128xf32>, i32 -> vector<8x128xf32>
    %c64_i32_100 = arith.constant 64 : i32
    %269 = tpu.dynamic_rotate %267 by %c64_i32_100 dim 1 : vector<8x128xf32>, i32 -> vector<8x128xf32>
    %c32_i32_101 = arith.constant 32 : i32
    %270 = tpu.dynamic_rotate %267 by %c32_i32_101 dim 1 : vector<8x128xf32>, i32 -> vector<8x128xf32>
    %271 = arith.mulf %268, %254 : vector<8x128xf32>
    %272 = arith.mulf %267, %270 : vector<8x128xf32>
    %273 = arith.addf %271, %272 : vector<8x128xf32>
    %274 = math.tanh %273 : vector<8x128xf32>
    %275 = arith.mulf %269, %274 : vector<8x128xf32>
    %c32_102 = arith.constant 32 : index
    %c0_103 = arith.constant 0 : index
    %276 = vector.load %arg3[%c32_102, %c0_103] : memref<64x128xf32, #tpu.memory_space<vmem>>, vector<8x128xf32>
    tpu.vector_store %arg3[%c32_102, %c0_103], %275 {strides = array<i32>} : memref<64x128xf32, #tpu.memory_space<vmem>>, vector<8x128xf32>,
    %277 = vector.extract_strided_slice %179 {offsets = [40, 0], sizes = [8, 128], strides = [1, 1]} : vector<64x128xf32> to vector<8x128xf32>
    %cst_104 = arith.constant dense<0.000000e+00> : vector<8x128xf32>
    %278 = tpu.matmul %275, %174, %cst_104 {dimension_numbers = #tpu.dot_dimension_numbers<[1], [0], [0], [1], [0, 0, 1, 1], [], []>} : vector<8x128xf32>, vector<128x128xf32>, vector<8x128xf32> -> vector<8x128xf32>
    %279 = arith.addf %277, %278 : vector<8x128xf32>
    %280 = arith.negf %279 : vector<8x128xf32>
    %281 = math.exp %280 : vector<8x128xf32>
    %cst_105 = arith.constant 1.000000e+00 : f32
    %282 = vector.broadcast %cst_105 : f32 to vector<8x128xf32>
    %283 = arith.addf %282, %281 : vector<8x128xf32>
    %284 = arith.divf %282, %283 : vector<8x128xf32>
    %285 = math.tanh %279 : vector<8x128xf32>
    %286 = arith.select %10, %284, %285 : vector<8x128xi1>, vector<8x128xf32>
    %c96_i32_106 = arith.constant 96 : i32
    %287 = tpu.dynamic_rotate %286 by %c96_i32_106 dim 1 : vector<8x128xf32>, i32 -> vector<8x128xf32>
    %c64_i32_107 = arith.constant 64 : i32
    %288 = tpu.dynamic_rotate %286 by %c64_i32_107 dim 1 : vector<8x128xf32>, i32 -> vector<8x128xf32>
    %c32_i32_108 = arith.constant 32 : i32
    %289 = tpu.dynamic_rotate %286 by %c32_i32_108 dim 1 : vector<8x128xf32>, i32 -> vector<8x128xf32>
    %290 = arith.mulf %287, %273 : vector<8x128xf32>
    %291 = arith.mulf %286, %289 : vector<8x128xf32>
    %292 = arith.addf %290, %291 : vector<8x128xf32>
    %293 = math.tanh %292 : vector<8x128xf32>
    %294 = arith.mulf %288, %293 : vector<8x128xf32>
    %c40_109 = arith.constant 40 : index
    %c0_110 = arith.constant 0 : index
    %295 = vector.load %arg3[%c40_109, %c0_110] : memref<64x128xf32, #tpu.memory_space<vmem>>, vector<8x128xf32>
    tpu.vector_store %arg3[%c40_109, %c0_110], %294 {strides = array<i32>} : memref<64x128xf32, #tpu.memory_space<vmem>>, vector<8x128xf32>,
    %296 = vector.extract_strided_slice %179 {offsets = [48, 0], sizes = [8, 128], strides = [1, 1]} : vector<64x128xf32> to vector<8x128xf32>
    %cst_111 = arith.constant dense<0.000000e+00> : vector<8x128xf32>
    %297 = tpu.matmul %294, %174, %cst_111 {dimension_numbers = #tpu.dot_dimension_numbers<[1], [0], [0], [1], [0, 0, 1, 1], [], []>} : vector<8x128xf32>, vector<128x128xf32>, vector<8x128xf32> -> vector<8x128xf32>
    %298 = arith.addf %296, %297 : vector<8x128xf32>
    %299 = arith.negf %298 : vector<8x128xf32>
    %300 = math.exp %299 : vector<8x128xf32>
    %cst_112 = arith.constant 1.000000e+00 : f32
    %301 = vector.broadcast %cst_112 : f32 to vector<8x128xf32>
    %302 = arith.addf %301, %300 : vector<8x128xf32>
    %303 = arith.divf %301, %302 : vector<8x128xf32>
    %304 = math.tanh %298 : vector<8x128xf32>
    %305 = arith.select %10, %303, %304 : vector<8x128xi1>, vector<8x128xf32>
    %c96_i32_113 = arith.constant 96 : i32
    %306 = tpu.dynamic_rotate %305 by %c96_i32_113 dim 1 : vector<8x128xf32>, i32 -> vector<8x128xf32>
    %c64_i32_114 = arith.constant 64 : i32
    %307 = tpu.dynamic_rotate %305 by %c64_i32_114 dim 1 : vector<8x128xf32>, i32 -> vector<8x128xf32>
    %c32_i32_115 = arith.constant 32 : i32
    %308 = tpu.dynamic_rotate %305 by %c32_i32_115 dim 1 : vector<8x128xf32>, i32 -> vector<8x128xf32>
    %309 = arith.mulf %306, %292 : vector<8x128xf32>
    %310 = arith.mulf %305, %308 : vector<8x128xf32>
    %311 = arith.addf %309, %310 : vector<8x128xf32>
    %312 = math.tanh %311 : vector<8x128xf32>
    %313 = arith.mulf %307, %312 : vector<8x128xf32>
    %c48_116 = arith.constant 48 : index
    %c0_117 = arith.constant 0 : index
    %314 = vector.load %arg3[%c48_116, %c0_117] : memref<64x128xf32, #tpu.memory_space<vmem>>, vector<8x128xf32>
    tpu.vector_store %arg3[%c48_116, %c0_117], %313 {strides = array<i32>} : memref<64x128xf32, #tpu.memory_space<vmem>>, vector<8x128xf32>,
    %315 = vector.extract_strided_slice %179 {offsets = [56, 0], sizes = [8, 128], strides = [1, 1]} : vector<64x128xf32> to vector<8x128xf32>
    %cst_118 = arith.constant dense<0.000000e+00> : vector<8x128xf32>
    %316 = tpu.matmul %313, %174, %cst_118 {dimension_numbers = #tpu.dot_dimension_numbers<[1], [0], [0], [1], [0, 0, 1, 1], [], []>} : vector<8x128xf32>, vector<128x128xf32>, vector<8x128xf32> -> vector<8x128xf32>
    %317 = arith.addf %315, %316 : vector<8x128xf32>
    %318 = arith.negf %317 : vector<8x128xf32>
    %319 = math.exp %318 : vector<8x128xf32>
    %cst_119 = arith.constant 1.000000e+00 : f32
    %320 = vector.broadcast %cst_119 : f32 to vector<8x128xf32>
    %321 = arith.addf %320, %319 : vector<8x128xf32>
    %322 = arith.divf %320, %321 : vector<8x128xf32>
    %323 = math.tanh %317 : vector<8x128xf32>
    %324 = arith.select %10, %322, %323 : vector<8x128xi1>, vector<8x128xf32>
    %c96_i32_120 = arith.constant 96 : i32
    %325 = tpu.dynamic_rotate %324 by %c96_i32_120 dim 1 : vector<8x128xf32>, i32 -> vector<8x128xf32>
    %c64_i32_121 = arith.constant 64 : i32
    %326 = tpu.dynamic_rotate %324 by %c64_i32_121 dim 1 : vector<8x128xf32>, i32 -> vector<8x128xf32>
    %c32_i32_122 = arith.constant 32 : i32
    %327 = tpu.dynamic_rotate %324 by %c32_i32_122 dim 1 : vector<8x128xf32>, i32 -> vector<8x128xf32>
    %328 = arith.mulf %325, %311 : vector<8x128xf32>
    %329 = arith.mulf %324, %327 : vector<8x128xf32>
    %330 = arith.addf %328, %329 : vector<8x128xf32>
    %331 = math.tanh %330 : vector<8x128xf32>
    %332 = arith.mulf %326, %331 : vector<8x128xf32>
    %c56_123 = arith.constant 56 : index
    %c0_124 = arith.constant 0 : index
    %333 = vector.load %arg3[%c56_123, %c0_124] : memref<64x128xf32, #tpu.memory_space<vmem>>, vector<8x128xf32>
    tpu.vector_store %arg3[%c56_123, %c0_124], %332 {strides = array<i32>} : memref<64x128xf32, #tpu.memory_space<vmem>>, vector<8x128xf32>,
    %c8_125 = arith.constant 8 : index
    %c0_126 = arith.constant 0 : index
    %334 = vector.load %arg4[%c8_125, %c0_126] : memref<16x128xf32, #tpu.memory_space<vmem>>, vector<8x128xf32>
    tpu.vector_store %arg4[%c8_125, %c0_126], %332 {strides = array<i32>} : memref<16x128xf32, #tpu.memory_space<vmem>>, vector<8x128xf32>,
    %c8_127 = arith.constant 8 : index
    %c0_128 = arith.constant 0 : index
    %335 = vector.load %arg5[%c8_127, %c0_128] : memref<16x128xf32, #tpu.memory_space<vmem>>, vector<8x128xf32>
    tpu.vector_store %arg5[%c8_127, %c0_128], %330 {strides = array<i32>} : memref<16x128xf32, #tpu.memory_space<vmem>>, vector<8x128xf32>,
    return
  }
}

</mosaic_0001>

<llo_original>
// kernel: encoder_forward.1
$region0: #{encoder_forward.1}
  #allocation0 [shape = 'u32[]', space=smem, size = 0x4, offset = 0x4, fixed_abs, tag = 'smem constant byte address 0x4 - core index']
  #allocation1 [shape = 'u32[72,128]{1,0:T(1,128)}', space=vmem, size = 0x9000, scoped, tag = 'internal scratch']
  %s0 = inlined_call_operand.vmem [shape: s32[64,1], index: 0, kind: input, shape index: {}]
  %s1 = inlined_call_operand.vmem [shape: f32[56,128], index: 1, kind: input, shape index: {}]
  %s2 = inlined_call_operand.hbm [shape: f32[528,128], index: 2, kind: input, shape index: {}]
  %s3 = inlined_call_operand.vmem [shape: f32[64,128], index: 3, kind: output, shape index: {0}]
  %s4 = inlined_call_operand.vmem [shape: f32[16,128], index: 4, kind: output, shape index: {1}]
  %s5 = inlined_call_operand.vmem [shape: f32[16,128], index: 5, kind: output, shape index: {2}]
  %6 = xla_tuple %s3, %s4, %s5
  %s7 = sld [smem:[#allocation0]]
  $region42: #{encoder_forward.1} parent=0
    _
  %s9 = ssub.s32 1, %s7
  %s10 = scalar_select 0, %s9, %s7
  $region1: #{encoder_forward.1} parent=0
    #allocation2 [shape = 'u8[270336]{0}', space=vmem, size = 0x42000, scoped, tag = 'input window, operand 2, single buffered']
    #allocation3 [shape = 's32[1]{0}', space=sflag, size = 0x4, scoped, tag = 'scoped memory for encoder_forward.1']
    %11 = vsyncpa [#allocation3], 0
    // Predicated region
    $region2: #{encoder_forward.1} parent=1 // pred_check
      _
    $region3: #{encoder_forward.1} parent=1 // pred_check_branch
      %13 = sbr.rel (0) target = $region5
    $region4: #{encoder_forward.1} parent=1 // pred_region
      _
    $region5: #{encoder_forward.1} parent=1 // pred_fallthru
      _
    // Predicated region
    $region6: #{encoder_forward.1} parent=1 // pred_check
      _
    $region7: #{encoder_forward.1} parent=1 // pred_check_branch
      %15 = sbr.rel (0) target = $region9
    $region8: #{encoder_forward.1} parent=1 // pred_region
      _
    $region9: #{encoder_forward.1} parent=1 // pred_fallthru
      _
    // Predicated region
    $region10: #{encoder_forward.1} parent=1 // pred_check
      _
    $region11: #{encoder_forward.1} parent=1 // pred_check_branch
      %17 = sbr.rel (0) target = $region13
    $region12: #{encoder_forward.1} parent=1 // pred_region
      %19 = vsyncadd [#allocation3], 0
      %s20 = sshll.u32 %s2, 4
      %s21 = int_to_ptr.hbm [resolvable:$true] %s20
      %s22 = sshll.u32 [#allocation2], 4
      %s23 = int_to_ptr.vmem [resolvable:$true] %s22
      %28 = dma.hbm_to_vmem [thread:$0]  %s21, 8448, %s23, [#allocation3], 128, 128, 8
    $region13: #{encoder_forward.1} parent=1 // pred_fallthru
      _
    // Predicated region
    $region14: #{encoder_forward.1} parent=1 // pred_check
      _
    $region15: #{encoder_forward.1} parent=1 // pred_check_branch
      %30 = sbr.rel (0) target = $region17
    $region16: #{encoder_forward.1} parent=1 // pred_region
      %32 = dma.done [#allocation3], 8448
    $region17: #{encoder_forward.1} parent=1 // pred_fallthru
      _
    %v33 = vld [vmem:[%s0] sm:$0xff]
    %v34 = vld [vmem:[%s0 + $0x8] sm:$0xff]
    %v35 = vld [vmem:[%s0 + $0x10] sm:$0xff]
    %v36 = vld [vmem:[%s0 + $0x18] sm:$0xff]
    %v37 = vld [vmem:[%s0 + $0x20] sm:$0xff]
    %v38 = vld [vmem:[%s0 + $0x28] sm:$0xff]
    %v39 = vld [vmem:[%s0 + $0x30] sm:$0xff]
    %v40 = vld [vmem:[%s0 + $0x38] sm:$0xff]
    %v41 = vlaneseq
    %v42 = vand.u32 %v41, 127
    %43 = vset.pattern.permute.xlu0 0
    %44 = vperm.xlu0 %43, %v33
    %v45 = vpop.permute.xlu0 %44
    %46 = vset.pattern.permute.xlu0 0
    %47 = vperm.xlu0 %46, %v34
    %v48 = vpop.permute.xlu0 %47
    %49 = vset.pattern.permute.xlu0 0
    %50 = vperm.xlu0 %49, %v35
    %v51 = vpop.permute.xlu0 %50
    %52 = vset.pattern.permute.xlu0 0
    %53 = vperm.xlu0 %52, %v36
    %v54 = vpop.permute.xlu0 %53
    %55 = vset.pattern.permute.xlu0 0
    %56 = vperm.xlu0 %55, %v37
    %v57 = vpop.permute.xlu0 %56
    %58 = vset.pattern.permute.xlu0 0
    %59 = vperm.xlu0 %58, %v38
    %v60 = vpop.permute.xlu0 %59
    %61 = vset.pattern.permute.xlu0 0
    %62 = vperm.xlu0 %61, %v39
    %v63 = vpop.permute.xlu0 %62
    %64 = vset.pattern.permute.xlu0 0
    %65 = vperm.xlu0 %64, %v40
    %v66 = vpop.permute.xlu0 %65
    %vm67 = vcmp.eq.s32.totalorder %v42, %v45
    %vm68 = vcmp.eq.s32.totalorder %v42, %v48
    %vm69 = vcmp.eq.s32.totalorder %v42, %v51
    %vm70 = vcmp.eq.s32.totalorder %v42, %v54
    %vm71 = vcmp.eq.s32.totalorder %v42, %v57
    %vm72 = vcmp.eq.s32.totalorder %v42, %v60
    %vm73 = vcmp.eq.s32.totalorder %v42, %v63
    %vm74 = vcmp.eq.s32.totalorder %v42, %v66
    %v75 = vsel %vm67, 1, 0
    %v76 = vsel %vm68, 1, 0
    %v77 = vsel %vm69, 1, 0
    %v78 = vsel %vm70, 1, 0
    %v79 = vsel %vm71, 1, 0
    %v80 = vsel %vm72, 1, 0
    %v81 = vsel %vm73, 1, 0
    %v82 = vsel %vm74, 1, 0
    %v83 = vcvt.s32.f32 %v75
    %v84 = vcvt.s32.f32 %v76
    %v85 = vcvt.s32.f32 %v77
    %v86 = vcvt.s32.f32 %v78
    %v87 = vcvt.s32.f32 %v79
    %v88 = vcvt.s32.f32 %v80
    %v89 = vcvt.s32.f32 %v81
    %v90 = vcvt.s32.f32 %v82
    %v91 = vld [vmem:[%s1] sm:$0xff]
    %v92 = vld [vmem:[%s1 + $0x8] sm:$0xff]
    %v93 = vld [vmem:[%s1 + $0x10] sm:$0xff]
    %v94 = vld [vmem:[%s1 + $0x18] sm:$0xff]
    %v95 = vld [vmem:[%s1 + $0x20] sm:$0xff]
    %v96 = vld [vmem:[%s1 + $0x28] sm:$0xff]
    %v97 = vld [vmem:[%s1 + $0x30] sm:$0xff]
    %vm98 = vcmask 457728
    %v100 = vsel %vm98, %v83, 0
    %v103 = vsel %vm98, %v84, 0
    %v106 = vsel %vm98, %v85, 0
    %v109 = vsel %vm98, %v86, 0
    %v112 = vsel %vm98, %v87, 0
    %v115 = vsel %vm98, %v88, 0
    %v118 = vsel %vm98, %v89, 0
    %v121 = vsel %vm98, %v90, 0
    %123 = vmatpush.msra.mxu0 0.0
    %124 = vmatpush.msra.mxu0 0.0
    %125 = vmatpush.msra.mxu0 0.0
    %126 = vmatpush.msra.mxu0 0.0
    %127 = vmatpush.msra.mxu0 0.0
    %128 = vmatpush.msra.mxu0 0.0
    %129 = vmatpush.msra.mxu0 0.0
    %130 = vmatpush.msra.mxu0 0.0
    %131 = vmatpush.msra.mxu0 0.0
    %132 = vmatpush.msra.mxu0 %v97
    %133 = vmatpush.msra.mxu0 %v96
    %134 = vmatpush.msra.mxu0 %v95
    %135 = vmatpush.msra.mxu0 %v94
    %136 = vmatpush.msra.mxu0 %v93
    %137 = vmatpush.msra.mxu0 %v92
    %138 = vmatpush.msra.mxu0 %v91
    %139 = vmatmul.f32.gmra.mxu0 %v100
    %v140 = vpop.f32.mrf.mxu0
    %v141 = vadd.f32 0.0, %v140
    %142 = vmatmul.f32.gmra.mxu0 %v103
    %v143 = vpop.f32.mrf.mxu0
    %v144 = vadd.f32 0.0, %v143
    %145 = vmatmul.f32.gmra.mxu0 %v106
    %v146 = vpop.f32.mrf.mxu0
    %v147 = vadd.f32 0.0, %v146
    %148 = vmatmul.f32.gmra.mxu0 %v109
    %v149 = vpop.f32.mrf.mxu0
    %v150 = vadd.f32 0.0, %v149
    %151 = vmatmul.f32.gmra.mxu0 %v112
    %v152 = vpop.f32.mrf.mxu0
    %v153 = vadd.f32 0.0, %v152
    %154 = vmatmul.f32.gmra.mxu0 %v115
    %v155 = vpop.f32.mrf.mxu0
    %v156 = vadd.f32 0.0, %v155
    %157 = vmatmul.f32.gmra.mxu0 %v118
    %v158 = vpop.f32.mrf.mxu0
    %v159 = vadd.f32 0.0, %v158
    %160 = vmatmul.f32.gmra.mxu0 %v121
    %v161 = vpop.f32.mrf.mxu0
    %v162 = vadd.f32 0.0, %v161
    %163 = vdwg.mxu0
    %vm164 = vcmp.lt.s32.totalorder %v42, 96
    %v165 = vld [vmem:[#allocation2] sm:$0xff]
    %v166 = vld [vmem:[#allocation2 + $0x8] sm:$0xff]
    %v167 = vld [vmem:[#allocation2 + $0x10] sm:$0xff]
    %v168 = vld [vmem:[#allocation2 + $0x18] sm:$0xff]
    %v169 = vld [vmem:[#allocation2 + $0x20] sm:$0xff]
    %v170 = vld [vmem:[#allocation2 + $0x28] sm:$0xff]
    %v171 = vld [vmem:[#allocation2 + $0x30] sm:$0xff]
    %v172 = vld [vmem:[#allocation2 + $0x38] sm:$0xff]
    %v173 = vld [vmem:[#allocation2 + $0x40] sm:$0xff]
    %v174 = vld [vmem:[#allocation2 + $0x48] sm:$0xff]
    %v175 = vld [vmem:[#allocation2 + $0x50] sm:$0xff]
    %v176 = vld [vmem:[#allocation2 + $0x58] sm:$0xff]
    %v177 = vld [vmem:[#allocation2 + $0x60] sm:$0xff]
    %v178 = vld [vmem:[#allocation2 + $0x68] sm:$0xff]
    %v179 = vld [vmem:[#allocation2 + $0x70] sm:$0xff]
    %v180 = vld [vmem:[#allocation2 + $0x78] sm:$0xff]
    %v181 = vld [vmem:[#allocation2 + $0x80] sm:$0xff]
    %v182 = vld [vmem:[#allocation2 + $0x88] sm:$0xff]
    %v183 = vld [vmem:[#allocation2 + $0x90] sm:$0xff]
    %v184 = vld [vmem:[#allocation2 + $0x98] sm:$0xff]
    %v185 = vld [vmem:[#allocation2 + $0xa0] sm:$0xff]
    %v186 = vld [vmem:[#allocation2 + $0xa8] sm:$0xff]
    %v187 = vld [vmem:[#allocation2 + $0xb0] sm:$0xff]
    %v188 = vld [vmem:[#allocation2 + $0xb8] sm:$0xff]
    %v189 = vld [vmem:[#allocation2 + $0xc0] sm:$0xff]
    %v190 = vld [vmem:[#allocation2 + $0xc8] sm:$0xff]
    %v191 = vld [vmem:[#allocation2 + $0xd0] sm:$0xff]
    %v192 = vld [vmem:[#allocation2 + $0xd8] sm:$0xff]
    %v193 = vld [vmem:[#allocation2 + $0xe0] sm:$0xff]
    %v194 = vld [vmem:[#allocation2 + $0xe8] sm:$0xff]
    %v195 = vld [vmem:[#allocation2 + $0xf0] sm:$0xff]
    %v196 = vld [vmem:[#allocation2 + $0xf8] sm:$0xff]
    %v197 = vld [vmem:[#allocation2 + $0x100] sm:$0x1]
    %v198 = vperm.slane %v197, 0
    %199 = vmatpush.msra.mxu0 %v180
    %200 = vmatpush.msra.mxu0 %v179
    %201 = vmatpush.msra.mxu0 %v178
    %202 = vmatpush.msra.mxu0 %v177
    %203 = vmatpush.msra.mxu0 %v176
    %204 = vmatpush.msra.mxu0 %v175
    %205 = vmatpush.msra.mxu0 %v174
    %206 = vmatpush.msra.mxu0 %v173
    %207 = vmatpush.msra.mxu0 %v172
    %208 = vmatpush.msra.mxu0 %v171
    %209 = vmatpush.msra.mxu0 %v170
    %210 = vmatpush.msra.mxu0 %v169
    %211 = vmatpush.msra.mxu0 %v168
    %212 = vmatpush.msra.mxu0 %v167
    %213 = vmatpush.msra.mxu0 %v166
    %214 = vmatpush.msra.mxu0 %v165
    %215 = vmatmul.f32.gmra.mxu0 %v141
    %v216 = vpop.f32.mrf.mxu0
    %v217 = vadd.f32 %v198, %v216
    %218 = vmatmul.f32.gmra.mxu0 %v144
    %v219 = vpop.f32.mrf.mxu0
    %v220 = vadd.f32 %v198, %v219
    %221 = vmatmul.f32.gmra.mxu0 %v147
    %v222 = vpop.f32.mrf.mxu0
    %v223 = vadd.f32 %v198, %v222
    %224 = vmatmul.f32.gmra.mxu0 %v150
    %v225 = vpop.f32.mrf.mxu0
    %v226 = vadd.f32 %v198, %v225
    %227 = vmatmul.f32.gmra.mxu0 %v153
    %v228 = vpop.f32.mrf.mxu0
    %v229 = vadd.f32 %v198, %v228
    %230 = vmatmul.f32.gmra.mxu0 %v156
    %v231 = vpop.f32.mrf.mxu0
    %v232 = vadd.f32 %v198, %v231
    %233 = vmatmul.f32.gmra.mxu0 %v159
    %v234 = vpop.f32.mrf.mxu0
    %v235 = vadd.f32 %v198, %v234
    %236 = vmatmul.f32.gmra.mxu0 %v162
    %v237 = vpop.f32.mrf.mxu0
    %v238 = vadd.f32 %v198, %v237
    %239 = vdwg.mxu0
    %240 = vmatpush.msra.mxu0 %v196
    %241 = vmatpush.msra.mxu0 %v195
    %242 = vmatpush.msra.mxu0 %v194
    %243 = vmatpush.msra.mxu0 %v193
    %244 = vmatpush.msra.mxu0 %v192
    %245 = vmatpush.msra.mxu0 %v191
    %246 = vmatpush.msra.mxu0 %v190
    %247 = vmatpush.msra.mxu0 %v189
    %248 = vmatpush.msra.mxu0 %v188
    %249 = vmatpush.msra.mxu0 %v187
    %250 = vmatpush.msra.mxu0 %v186
    %251 = vmatpush.msra.mxu0 %v185
    %252 = vmatpush.msra.mxu0 %v184
    %253 = vmatpush.msra.mxu0 %v183
    %254 = vmatpush.msra.mxu0 %v182
    %255 = vmatpush.msra.mxu0 %v181
    %256 = vmatmul.f32.gmra.mxu0 0.0
    %v257 = vpop.f32.mrf.mxu0
    %v258 = vadd.f32 0.0, %v257
    %259 = vdwg.mxu0
    %v260 = vadd.f32 %v217, %v258
    %v261 = vxor.u32 %v260, 2147483648
    %v262 = vmul.f32 %v261, 1.442695
    %v263 = vpow.pop %v262
    %v264 = vadd.f32 %v263, 1.0
    %v265 = vrcp.pop %v264
    %v266 = vmul.f32 %v264, %v265
    %v267 = vsub.f32 1.0, %v266
    %v268 = vmul.f32 %v265, %v267
    %v269 = vadd.f32 %v265, %v268
    %vm270 = vweird.f32 %v264
    %vm271 = vweird.f32 %v265
    %vm272 = vmor %vm270, %vm271
    %v273 = vsel %vm272, %v265, %v269
    %v274 = vand.u32 2147483647, %v264
    %vm275 = vcmp.eq.f32.partialorder %v274, 8.507059e+37
    %v276 = vand.u32 %v264, 2147483648
    %v277 = vor.u32 1.1754944e-38, %v276
    %v278 = vsel %vm275, %v277, %v273
    %v279 = vmul.f32 1.0, %v278
    %v280 = vtanh.pop %v260
    %v281 = vsel %vm164, %v279, %v280
    %282 = vrot.lane.b32.xlu0 %v281, 96
    %v283 = vpop.permute.xlu0 %282
    %284 = vrot.lane.b32.xlu0 %v281, 64
    %v285 = vpop.permute.xlu0 %284
    %286 = vrot.lane.b32.xlu0 %v281, 32
    %v287 = vpop.permute.xlu0 %286
    %v288 = vmul.f32 %v283, 0.0
    %v289 = vmul.f32 %v281, %v287
    %v290 = vadd.f32 %v288, %v289
    %v291 = vtanh.pop %v290
    %v292 = vmul.f32 %v285, %v291
    %293 = vst [vmem:[%s3] sm:$0xff] %v292
    %294 = vmatpush.msra.mxu0 %v196
    %295 = vmatpush.msra.mxu0 %v195
    %296 = vmatpush.msra.mxu0 %v194
    %297 = vmatpush.msra.mxu0 %v193
    %298 = vmatpush.msra.mxu0 %v192
    %299 = vmatpush.msra.mxu0 %v191
    %300 = vmatpush.msra.mxu0 %v190
    %301 = vmatpush.msra.mxu0 %v189
    %302 = vmatpush.msra.mxu0 %v188
    %303 = vmatpush.msra.mxu0 %v187
    %304 = vmatpush.msra.mxu0 %v186
    %305 = vmatpush.msra.mxu0 %v185
    %306 = vmatpush.msra.mxu0 %v184
    %307 = vmatpush.msra.mxu0 %v183
    %308 = vmatpush.msra.mxu0 %v182
    %309 = vmatpush.msra.mxu0 %v181
    %310 = vmatmul.f32.gmra.mxu0 %v292
    %v311 = vpop.f32.mrf.mxu0
    %v312 = vadd.f32 0.0, %v311
    %313 = vdwg.mxu0
    %v314 = vadd.f32 %v220, %v312
    %v315 = vxor.u32 %v314, 2147483648
    %v316 = vmul.f32 %v315, 1.442695
    %v317 = vpow.pop %v316
    %v318 = vadd.f32 %v317, 1.0
    %v319 = vrcp.pop %v318
    %v320 = vmul.f32 %v318, %v319
    %v321 = vsub.f32 1.0, %v320
    %v322 = vmul.f32 %v319, %v321
    %v323 = vadd.f32 %v319, %v322
    %vm324 = vweird.f32 %v318
    %vm325 = vweird.f32 %v319
    %vm326 = vmor %vm324, %vm325
    %v327 = vsel %vm326, %v319, %v323
    %v328 = vand.u32 2147483647, %v318
    %vm329 = vcmp.eq.f32.partialorder %v328, 8.507059e+37
    %v330 = vand.u32 %v318, 2147483648
    %v331 = vor.u32 1.1754944e-38, %v330
    %v332 = vsel %vm329, %v331, %v327
    %v333 = vmul.f32 1.0, %v332
    %v334 = vtanh.pop %v314
    %v335 = vsel %vm164, %v333, %v334
    %336 = vrot.lane.b32.xlu0 %v335, 96
    %v337 = vpop.permute.xlu0 %336
    %338 = vrot.lane.b32.xlu0 %v335, 64
    %v339 = vpop.permute.xlu0 %338
    %340 = vrot.lane.b32.xlu0 %v335, 32
    %v341 = vpop.permute.xlu0 %340
    %v342 = vmul.f32 %v337, %v290
    %v343 = vmul.f32 %v335, %v341
    %v344 = vadd.f32 %v342, %v343
    %v345 = vtanh.pop %v344
    %v346 = vmul.f32 %v339, %v345
    %347 = vst [vmem:[%s3 + $0x8] sm:$0xff] %v346
    %348 = vmatpush.msra.mxu0 %v196
    %349 = vmatpush.msra.mxu0 %v195
    %350 = vmatpush.msra.mxu0 %v194
    %351 = vmatpush.msra.mxu0 %v193
    %352 = vmatpush.msra.mxu0 %v192
    %353 = vmatpush.msra.mxu0 %v191
    %354 = vmatpush.msra.mxu0 %v190
    %355 = vmatpush.msra.mxu0 %v189
    %356 = vmatpush.msra.mxu0 %v188
    %357 = vmatpush.msra.mxu0 %v187
    %358 = vmatpush.msra.mxu0 %v186
    %359 = vmatpush.msra.mxu0 %v185
    %360 = vmatpush.msra.mxu0 %v184
    %361 = vmatpush.msra.mxu0 %v183
    %362 = vmatpush.msra.mxu0 %v182
    %363 = vmatpush.msra.mxu0 %v181
    %364 = vmatmul.f32.gmra.mxu0 %v346
    %v365 = vpop.f32.mrf.mxu0
    %v366 = vadd.f32 0.0, %v365
    %367 = vdwg.mxu0
    %v368 = vadd.f32 %v223, %v366
    %v369 = vxor.u32 %v368, 2147483648
    %v370 = vmul.f32 %v369, 1.442695
    %v371 = vpow.pop %v370
    %v372 = vadd.f32 %v371, 1.0
    %v373 = vrcp.pop %v372
    %v374 = vmul.f32 %v372, %v373
    %v375 = vsub.f32 1.0, %v374
    %v376 = vmul.f32 %v373, %v375
    %v377 = vadd.f32 %v373, %v376
    %vm378 = vweird.f32 %v372
    %vm379 = vweird.f32 %v373
    %vm380 = vmor %vm378, %vm379
    %v381 = vsel %vm380, %v373, %v377
    %v382 = vand.u32 2147483647, %v372
    %vm383 = vcmp.eq.f32.partialorder %v382, 8.507059e+37
    %v384 = vand.u32 %v372, 2147483648
    %v385 = vor.u32 1.1754944e-38, %v384
    %v386 = vsel %vm383, %v385, %v381
    %v387 = vmul.f32 1.0, %v386
    %v388 = vtanh.pop %v368
    %v389 = vsel %vm164, %v387, %v388
    %390 = vrot.lane.b32.xlu0 %v389, 96
    %v391 = vpop.permute.xlu0 %390
    %392 = vrot.lane.b32.xlu0 %v389, 64
    %v393 = vpop.permute.xlu0 %392
    %394 = vrot.lane.b32.xlu0 %v389, 32
    %v395 = vpop.permute.xlu0 %394
    %v396 = vmul.f32 %v391, %v344
    %v397 = vmul.f32 %v389, %v395
    %v398 = vadd.f32 %v396, %v397
    %v399 = vtanh.pop %v398
    %v400 = vmul.f32 %v393, %v399
    %401 = vst [vmem:[%s3 + $0x10] sm:$0xff] %v400
    %402 = vmatpush.msra.mxu0 %v196
    %403 = vmatpush.msra.mxu0 %v195
    %404 = vmatpush.msra.mxu0 %v194
    %405 = vmatpush.msra.mxu0 %v193
    %406 = vmatpush.msra.mxu0 %v192
    %407 = vmatpush.msra.mxu0 %v191
    %408 = vmatpush.msra.mxu0 %v190
    %409 = vmatpush.msra.mxu0 %v189
    %410 = vmatpush.msra.mxu0 %v188
    %411 = vmatpush.msra.mxu0 %v187
    %412 = vmatpush.msra.mxu0 %v186
    %413 = vmatpush.msra.mxu0 %v185
    %414 = vmatpush.msra.mxu0 %v184
    %415 = vmatpush.msra.mxu0 %v183
    %416 = vmatpush.msra.mxu0 %v182
    %417 = vmatpush.msra.mxu0 %v181
    %418 = vmatmul.f32.gmra.mxu0 %v400
    %v419 = vpop.f32.mrf.mxu0
    %v420 = vadd.f32 0.0, %v419
    %421 = vdwg.mxu0
    %v422 = vadd.f32 %v226, %v420
    %v423 = vxor.u32 %v422, 2147483648
    %v424 = vmul.f32 %v423, 1.442695
    %v425 = vpow.pop %v424
    %v426 = vadd.f32 %v425, 1.0
    %v427 = vrcp.pop %v426
    %v428 = vmul.f32 %v426, %v427
    %v429 = vsub.f32 1.0, %v428
    %v430 = vmul.f32 %v427, %v429
    %v431 = vadd.f32 %v427, %v430
    %vm432 = vweird.f32 %v426
    %vm433 = vweird.f32 %v427
    %vm434 = vmor %vm432, %vm433
    %v435 = vsel %vm434, %v427, %v431
    %v436 = vand.u32 2147483647, %v426
    %vm437 = vcmp.eq.f32.partialorder %v436, 8.507059e+37
    %v438 = vand.u32 %v426, 2147483648
    %v439 = vor.u32 1.1754944e-38, %v438
    %v440 = vsel %vm437, %v439, %v435
    %v441 = vmul.f32 1.0, %v440
    %v442 = vtanh.pop %v422
    %v443 = vsel %vm164, %v441, %v442
    %444 = vrot.lane.b32.xlu0 %v443, 96
    %v445 = vpop.permute.xlu0 %444
    %446 = vrot.lane.b32.xlu0 %v443, 64
    %v447 = vpop.permute.xlu0 %446
    %448 = vrot.lane.b32.xlu0 %v443, 32
    %v449 = vpop.permute.xlu0 %448
    %v450 = vmul.f32 %v445, %v398
    %v451 = vmul.f32 %v443, %v449
    %v452 = vadd.f32 %v450, %v451
    %v453 = vtanh.pop %v452
    %v454 = vmul.f32 %v447, %v453
    %455 = vst [vmem:[%s3 + $0x18] sm:$0xff] %v454
    %456 = vmatpush.msra.mxu0 %v196
    %457 = vmatpush.msra.mxu0 %v195
    %458 = vmatpush.msra.mxu0 %v194
    %459 = vmatpush.msra.mxu0 %v193
    %460 = vmatpush.msra.mxu0 %v192
    %461 = vmatpush.msra.mxu0 %v191
    %462 = vmatpush.msra.mxu0 %v190
    %463 = vmatpush.msra.mxu0 %v189
    %464 = vmatpush.msra.mxu0 %v188
    %465 = vmatpush.msra.mxu0 %v187
    %466 = vmatpush.msra.mxu0 %v186
    %467 = vmatpush.msra.mxu0 %v185
    %468 = vmatpush.msra.mxu0 %v184
    %469 = vmatpush.msra.mxu0 %v183
    %470 = vmatpush.msra.mxu0 %v182
    %471 = vmatpush.msra.mxu0 %v181
    %472 = vmatmul.f32.gmra.mxu0 %v454
    %v473 = vpop.f32.mrf.mxu0
    %v474 = vadd.f32 0.0, %v473
    %475 = vdwg.mxu0
    %v476 = vadd.f32 %v229, %v474
    %v477 = vxor.u32 %v476, 2147483648
    %v478 = vmul.f32 %v477, 1.442695
    %v479 = vpow.pop %v478
    %v480 = vadd.f32 %v479, 1.0
    %v481 = vrcp.pop %v480
    %v482 = vmul.f32 %v480, %v481
    %v483 = vsub.f32 1.0, %v482
    %v484 = vmul.f32 %v481, %v483
    %v485 = vadd.f32 %v481, %v484
    %vm486 = vweird.f32 %v480
    %vm487 = vweird.f32 %v481
    %vm488 = vmor %vm486, %vm487
    %v489 = vsel %vm488, %v481, %v485
    %v490 = vand.u32 2147483647, %v480
    %vm491 = vcmp.eq.f32.partialorder %v490, 8.507059e+37
    %v492 = vand.u32 %v480, 2147483648
    %v493 = vor.u32 1.1754944e-38, %v492
    %v494 = vsel %vm491, %v493, %v489
    %v495 = vmul.f32 1.0, %v494
    %v496 = vtanh.pop %v476
    %v497 = vsel %vm164, %v495, %v496
    %498 = vrot.lane.b32.xlu0 %v497, 96
    %v499 = vpop.permute.xlu0 %498
    %500 = vrot.lane.b32.xlu0 %v497, 64
    %v501 = vpop.permute.xlu0 %500
    %502 = vrot.lane.b32.xlu0 %v497, 32
    %v503 = vpop.permute.xlu0 %502
    %v504 = vmul.f32 %v499, %v452
    %v505 = vmul.f32 %v497, %v503
    %v506 = vadd.f32 %v504, %v505
    %v507 = vtanh.pop %v506
    %v508 = vmul.f32 %v501, %v507
    %509 = vst [vmem:[%s3 + $0x20] sm:$0xff] %v508
    %510 = vmatpush.msra.mxu0 %v196
    %511 = vmatpush.msra.mxu0 %v195
    %512 = vmatpush.msra.mxu0 %v194
    %513 = vmatpush.msra.mxu0 %v193
    %514 = vmatpush.msra.mxu0 %v192
    %515 = vmatpush.msra.mxu0 %v191
    %516 = vmatpush.msra.mxu0 %v190
    %517 = vmatpush.msra.mxu0 %v189
    %518 = vmatpush.msra.mxu0 %v188
    %519 = vmatpush.msra.mxu0 %v187
    %520 = vmatpush.msra.mxu0 %v186
    %521 = vmatpush.msra.mxu0 %v185
    %522 = vmatpush.msra.mxu0 %v184
    %523 = vmatpush.msra.mxu0 %v183
    %524 = vmatpush.msra.mxu0 %v182
    %525 = vmatpush.msra.mxu0 %v181
    %526 = vmatmul.f32.gmra.mxu0 %v508
    %v527 = vpop.f32.mrf.mxu0
    %v528 = vadd.f32 0.0, %v527
    %529 = vdwg.mxu0
    %v530 = vadd.f32 %v232, %v528
    %v531 = vxor.u32 %v530, 2147483648
    %v532 = vmul.f32 %v531, 1.442695
    %v533 = vpow.pop %v532
    %v534 = vadd.f32 %v533, 1.0
    %v535 = vrcp.pop %v534
    %v536 = vmul.f32 %v534, %v535
    %v537 = vsub.f32 1.0, %v536
    %v538 = vmul.f32 %v535, %v537
    %v539 = vadd.f32 %v535, %v538
    %vm540 = vweird.f32 %v534
    %vm541 = vweird.f32 %v535
    %vm542 = vmor %vm540, %vm541
    %v543 = vsel %vm542, %v535, %v539
    %v544 = vand.u32 2147483647, %v534
    %vm545 = vcmp.eq.f32.partialorder %v544, 8.507059e+37
    %v546 = vand.u32 %v534, 2147483648
    %v547 = vor.u32 1.1754944e-38, %v546
    %v548 = vsel %vm545, %v547, %v543
    %v549 = vmul.f32 1.0, %v548
    %v550 = vtanh.pop %v530
    %v551 = vsel %vm164, %v549, %v550
    %552 = vrot.lane.b32.xlu0 %v551, 96
    %v553 = vpop.permute.xlu0 %552
    %554 = vrot.lane.b32.xlu0 %v551, 64
    %v555 = vpop.permute.xlu0 %554
    %556 = vrot.lane.b32.xlu0 %v551, 32
    %v557 = vpop.permute.xlu0 %556
    %v558 = vmul.f32 %v553, %v506
    %v559 = vmul.f32 %v551, %v557
    %v560 = vadd.f32 %v558, %v559
    %v561 = vtanh.pop %v560
    %v562 = vmul.f32 %v555, %v561
    %563 = vst [vmem:[%s3 + $0x28] sm:$0xff] %v562
    %564 = vmatpush.msra.mxu0 %v196
    %565 = vmatpush.msra.mxu0 %v195
    %566 = vmatpush.msra.mxu0 %v194
    %567 = vmatpush.msra.mxu0 %v193
    %568 = vmatpush.msra.mxu0 %v192
    %569 = vmatpush.msra.mxu0 %v191
    %570 = vmatpush.msra.mxu0 %v190
    %571 = vmatpush.msra.mxu0 %v189
    %572 = vmatpush.msra.mxu0 %v188
    %573 = vmatpush.msra.mxu0 %v187
    %574 = vmatpush.msra.mxu0 %v186
    %575 = vmatpush.msra.mxu0 %v185
    %576 = vmatpush.msra.mxu0 %v184
    %577 = vmatpush.msra.mxu0 %v183
    %578 = vmatpush.msra.mxu0 %v182
    %579 = vmatpush.msra.mxu0 %v181
    %580 = vmatmul.f32.gmra.mxu0 %v562
    %v581 = vpop.f32.mrf.mxu0
    %v582 = vadd.f32 0.0, %v581
    %583 = vdwg.mxu0
    %v584 = vadd.f32 %v235, %v582
    %v585 = vxor.u32 %v584, 2147483648
    %v586 = vmul.f32 %v585, 1.442695
    %v587 = vpow.pop %v586
    %v588 = vadd.f32 %v587, 1.0
    %v589 = vrcp.pop %v588
    %v590 = vmul.f32 %v588, %v589
    %v591 = vsub.f32 1.0, %v590
    %v592 = vmul.f32 %v589, %v591
    %v593 = vadd.f32 %v589, %v592
    %vm594 = vweird.f32 %v588
    %vm595 = vweird.f32 %v589
    %vm596 = vmor %vm594, %vm595
    %v597 = vsel %vm596, %v589, %v593
    %v598 = vand.u32 2147483647, %v588
    %vm599 = vcmp.eq.f32.partialorder %v598, 8.507059e+37
    %v600 = vand.u32 %v588, 2147483648
    %v601 = vor.u32 1.1754944e-38, %v600
    %v602 = vsel %vm599, %v601, %v597
    %v603 = vmul.f32 1.0, %v602
    %v604 = vtanh.pop %v584
    %v605 = vsel %vm164, %v603, %v604
    %606 = vrot.lane.b32.xlu0 %v605, 96
    %v607 = vpop.permute.xlu0 %606
    %608 = vrot.lane.b32.xlu0 %v605, 64
    %v609 = vpop.permute.xlu0 %608
    %610 = vrot.lane.b32.xlu0 %v605, 32
    %v611 = vpop.permute.xlu0 %610
    %v612 = vmul.f32 %v607, %v560
    %v613 = vmul.f32 %v605, %v611
    %v614 = vadd.f32 %v612, %v613
    %v615 = vtanh.pop %v614
    %v616 = vmul.f32 %v609, %v615
    %617 = vst [vmem:[%s3 + $0x30] sm:$0xff] %v616
    %618 = vmatpush.msra.mxu0 %v196
    %619 = vmatpush.msra.mxu0 %v195
    %620 = vmatpush.msra.mxu0 %v194
    %621 = vmatpush.msra.mxu0 %v193
    %622 = vmatpush.msra.mxu0 %v192
    %623 = vmatpush.msra.mxu0 %v191
    %624 = vmatpush.msra.mxu0 %v190
    %625 = vmatpush.msra.mxu0 %v189
    %626 = vmatpush.msra.mxu0 %v188
    %627 = vmatpush.msra.mxu0 %v187
    %628 = vmatpush.msra.mxu0 %v186
    %629 = vmatpush.msra.mxu0 %v185
    %630 = vmatpush.msra.mxu0 %v184
    %631 = vmatpush.msra.mxu0 %v183
    %632 = vmatpush.msra.mxu0 %v182
    %633 = vmatpush.msra.mxu0 %v181
    %634 = vmatmul.f32.gmra.mxu0 %v616
    %v635 = vpop.f32.mrf.mxu0
    %v636 = vadd.f32 0.0, %v635
    %637 = vdwg.mxu0
    %v638 = vadd.f32 %v238, %v636
    %v639 = vxor.u32 %v638, 2147483648
    %v640 = vmul.f32 %v639, 1.442695
    %v641 = vpow.pop %v640
    %v642 = vadd.f32 %v641, 1.0
    %v643 = vrcp.pop %v642
    %v644 = vmul.f32 %v642, %v643
    %v645 = vsub.f32 1.0, %v644
    %v646 = vmul.f32 %v643, %v645
    %v647 = vadd.f32 %v643, %v646
    %vm648 = vweird.f32 %v642
    %vm649 = vweird.f32 %v643
    %vm650 = vmor %vm648, %vm649
    %v651 = vsel %vm650, %v643, %v647
    %v652 = vand.u32 2147483647, %v642
    %vm653 = vcmp.eq.f32.partialorder %v652, 8.507059e+37
    %v654 = vand.u32 %v642, 2147483648
    %v655 = vor.u32 1.1754944e-38, %v654
    %v656 = vsel %vm653, %v655, %v651
    %v657 = vmul.f32 1.0, %v656
    %v658 = vtanh.pop %v638
    %v659 = vsel %vm164, %v657, %v658
    %660 = vrot.lane.b32.xlu0 %v659, 96
    %v661 = vpop.permute.xlu0 %660
    %662 = vrot.lane.b32.xlu0 %v659, 64
    %v663 = vpop.permute.xlu0 %662
    %664 = vrot.lane.b32.xlu0 %v659, 32
    %v665 = vpop.permute.xlu0 %664
    %v666 = vmul.f32 %v661, %v614
    %v667 = vmul.f32 %v659, %v665
    %v668 = vadd.f32 %v666, %v667
    %v669 = vtanh.pop %v668
    %v670 = vmul.f32 %v663, %v669
    %671 = vst [vmem:[%s3 + $0x38] sm:$0xff] %v670
    %672 = vst [vmem:[%s4] sm:$0xff] %v670
    %673 = vst [vmem:[%s5] sm:$0xff] %v668
    %v674 = vld [vmem:[#allocation2 + $0x108] sm:$0xff]
    %v675 = vld [vmem:[#allocation2 + $0x110] sm:$0xff]
    %v676 = vld [vmem:[#allocation2 + $0x118] sm:$0xff]
    %v677 = vld [vmem:[#allocation2 + $0x120] sm:$0xff]
    %v678 = vld [vmem:[#allocation2 + $0x128] sm:$0xff]
    %v679 = vld [vmem:[#allocation2 + $0x130] sm:$0xff]
    %v680 = vld [vmem:[#allocation2 + $0x138] sm:$0xff]
    %v681 = vld [vmem:[#allocation2 + $0x140] sm:$0xff]
    %v682 = vld [vmem:[#allocation2 + $0x148] sm:$0xff]
    %v683 = vld [vmem:[#allocation2 + $0x150] sm:$0xff]
    %v684 = vld [vmem:[#allocation2 + $0x158] sm:$0xff]
    %v685 = vld [vmem:[#allocation2 + $0x160] sm:$0xff]
    %v686 = vld [vmem:[#allocation2 + $0x168] sm:$0xff]
    %v687 = vld [vmem:[#allocation2 + $0x170] sm:$0xff]
    %v688 = vld [vmem:[#allocation2 + $0x178] sm:$0xff]
    %v689 = vld [vmem:[#allocation2 + $0x180] sm:$0xff]
    %v690 = vld [vmem:[#allocation2 + $0x188] sm:$0xff]
    %v691 = vld [vmem:[#allocation2 + $0x190] sm:$0xff]
    %v692 = vld [vmem:[#allocation2 + $0x198] sm:$0xff]
    %v693 = vld [vmem:[#allocation2 + $0x1a0] sm:$0xff]
    %v694 = vld [vmem:[#allocation2 + $0x1a8] sm:$0xff]
    %v695 = vld [vmem:[#allocation2 + $0x1b0] sm:$0xff]
    %v696 = vld [vmem:[#allocation2 + $0x1b8] sm:$0xff]
    %v697 = vld [vmem:[#allocation2 + $0x1c0] sm:$0xff]
    %v698 = vld [vmem:[#allocation2 + $0x1c8] sm:$0xff]
    %v699 = vld [vmem:[#allocation2 + $0x1d0] sm:$0xff]
    %v700 = vld [vmem:[#allocation2 + $0x1d8] sm:$0xff]
    %v701 = vld [vmem:[#allocation2 + $0x1e0] sm:$0xff]
    %v702 = vld [vmem:[#allocation2 + $0x1e8] sm:$0xff]
    %v703 = vld [vmem:[#allocation2 + $0x1f0] sm:$0xff]
    %v704 = vld [vmem:[#allocation2 + $0x1f8] sm:$0xff]
    %v705 = vld [vmem:[#allocation2 + $0x200] sm:$0xff]
    %v706 = vld [vmem:[#allocation2 + $0x208] sm:$0x1]
    %v707 = vld [vmem:[%s3] sm:$0xff]
    %v708 = vld [vmem:[%s3 + $0x8] sm:$0xff]
    %v709 = vld [vmem:[%s3 + $0x10] sm:$0xff]
    %v710 = vld [vmem:[%s3 + $0x18] sm:$0xff]
    %v711 = vld [vmem:[%s3 + $0x20] sm:$0xff]
    %v712 = vld [vmem:[%s3 + $0x28] sm:$0xff]
    %v713 = vld [vmem:[%s3 + $0x30] sm:$0xff]
    %v714 = vld [vmem:[%s3 + $0x38] sm:$0xff]
    %v715 = vperm.slane %v706, 0
    %716 = vmatpush.msra.mxu0 %v689
    %717 = vmatpush.msra.mxu0 %v688
    %718 = vmatpush.msra.mxu0 %v687
    %719 = vmatpush.msra.mxu0 %v686
    %720 = vmatpush.msra.mxu0 %v685
    %721 = vmatpush.msra.mxu0 %v684
    %722 = vmatpush.msra.mxu0 %v683
    %723 = vmatpush.msra.mxu0 %v682
    %724 = vmatpush.msra.mxu0 %v681
    %725 = vmatpush.msra.mxu0 %v680
    %726 = vmatpush.msra.mxu0 %v679
    %727 = vmatpush.msra.mxu0 %v678
    %728 = vmatpush.msra.mxu0 %v677
    %729 = vmatpush.msra.mxu0 %v676
    %730 = vmatpush.msra.mxu0 %v675
    %731 = vmatpush.msra.mxu0 %v674
    %732 = vmatmul.f32.gmra.mxu0 %v707
    %v733 = vpop.f32.mrf.mxu0
    %v734 = vadd.f32 %v715, %v733
    %735 = vmatmul.f32.gmra.mxu0 %v708
    %v736 = vpop.f32.mrf.mxu0
    %v737 = vadd.f32 %v715, %v736
    %738 = vmatmul.f32.gmra.mxu0 %v709
    %v739 = vpop.f32.mrf.mxu0
    %v740 = vadd.f32 %v715, %v739
    %741 = vmatmul.f32.gmra.mxu0 %v710
    %v742 = vpop.f32.mrf.mxu0
    %v743 = vadd.f32 %v715, %v742
    %744 = vmatmul.f32.gmra.mxu0 %v711
    %v745 = vpop.f32.mrf.mxu0
    %v746 = vadd.f32 %v715, %v745
    %747 = vmatmul.f32.gmra.mxu0 %v712
    %v748 = vpop.f32.mrf.mxu0
    %v749 = vadd.f32 %v715, %v748
    %750 = vmatmul.f32.gmra.mxu0 %v713
    %v751 = vpop.f32.mrf.mxu0
    %v752 = vadd.f32 %v715, %v751
    %753 = vmatmul.f32.gmra.mxu0 %v714
    %v754 = vpop.f32.mrf.mxu0
    %v755 = vadd.f32 %v715, %v754
    %756 = vdwg.mxu0
    %757 = vmatpush.msra.mxu0 %v705
    %758 = vmatpush.msra.mxu0 %v704
    %759 = vmatpush.msra.mxu0 %v703
    %760 = vmatpush.msra.mxu0 %v702
    %761 = vmatpush.msra.mxu0 %v701
    %762 = vmatpush.msra.mxu0 %v700
    %763 = vmatpush.msra.mxu0 %v699
    %764 = vmatpush.msra.mxu0 %v698
    %765 = vmatpush.msra.mxu0 %v697
    %766 = vmatpush.msra.mxu0 %v696
    %767 = vmatpush.msra.mxu0 %v695
    %768 = vmatpush.msra.mxu0 %v694
    %769 = vmatpush.msra.mxu0 %v693
    %770 = vmatpush.msra.mxu0 %v692
    %771 = vmatpush.msra.mxu0 %v691
    %772 = vmatpush.msra.mxu0 %v690
    %773 = vmatmul.f32.gmra.mxu0 0.0
    %v774 = vpop.f32.mrf.mxu0
    %v775 = vadd.f32 0.0, %v774
    %776 = vdwg.mxu0
    %v777 = vadd.f32 %v734, %v775
    %v778 = vxor.u32 %v777, 2147483648
    %v779 = vmul.f32 %v778, 1.442695
    %v780 = vpow.pop %v779
    %v781 = vadd.f32 %v780, 1.0
    %v782 = vrcp.pop %v781
    %v783 = vmul.f32 %v781, %v782
    %v784 = vsub.f32 1.0, %v783
    %v785 = vmul.f32 %v782, %v784
    %v786 = vadd.f32 %v782, %v785
    %vm787 = vweird.f32 %v781
    %vm788 = vweird.f32 %v782
    %vm789 = vmor %vm787, %vm788
    %v790 = vsel %vm789, %v782, %v786
    %v791 = vand.u32 2147483647, %v781
    %vm792 = vcmp.eq.f32.partialorder %v791, 8.507059e+37
    %v793 = vand.u32 %v781, 2147483648
    %v794 = vor.u32 1.1754944e-38, %v793
    %v795 = vsel %vm792, %v794, %v790
    %v796 = vmul.f32 1.0, %v795
    %v797 = vtanh.pop %v777
    %v798 = vsel %vm164, %v796, %v797
    %799 = vrot.lane.b32.xlu0 %v798, 96
    %v800 = vpop.permute.xlu0 %799
    %801 = vrot.lane.b32.xlu0 %v798, 64
    %v802 = vpop.permute.xlu0 %801
    %803 = vrot.lane.b32.xlu0 %v798, 32
    %v804 = vpop.permute.xlu0 %803
    %v805 = vmul.f32 %v800, 0.0
    %v806 = vmul.f32 %v798, %v804
    %v807 = vadd.f32 %v805, %v806
    %v808 = vtanh.pop %v807
    %v809 = vmul.f32 %v802, %v808
    %810 = vst [vmem:[%s3] sm:$0xff] %v809
    %811 = vmatpush.msra.mxu0 %v705
    %812 = vmatpush.msra.mxu0 %v704
    %813 = vmatpush.msra.mxu0 %v703
    %814 = vmatpush.msra.mxu0 %v702
    %815 = vmatpush.msra.mxu0 %v701
    %816 = vmatpush.msra.mxu0 %v700
    %817 = vmatpush.msra.mxu0 %v699
    %818 = vmatpush.msra.mxu0 %v698
    %819 = vmatpush.msra.mxu0 %v697
    %820 = vmatpush.msra.mxu0 %v696
    %821 = vmatpush.msra.mxu0 %v695
    %822 = vmatpush.msra.mxu0 %v694
    %823 = vmatpush.msra.mxu0 %v693
    %824 = vmatpush.msra.mxu0 %v692
    %825 = vmatpush.msra.mxu0 %v691
    %826 = vmatpush.msra.mxu0 %v690
    %827 = vmatmul.f32.gmra.mxu0 %v809
    %v828 = vpop.f32.mrf.mxu0
    %v829 = vadd.f32 0.0, %v828
    %830 = vdwg.mxu0
    %v831 = vadd.f32 %v737, %v829
    %v832 = vxor.u32 %v831, 2147483648
    %v833 = vmul.f32 %v832, 1.442695
    %v834 = vpow.pop %v833
    %v835 = vadd.f32 %v834, 1.0
    %v836 = vrcp.pop %v835
    %v837 = vmul.f32 %v835, %v836
    %v838 = vsub.f32 1.0, %v837
    %v839 = vmul.f32 %v836, %v838
    %v840 = vadd.f32 %v836, %v839
    %vm841 = vweird.f32 %v835
    %vm842 = vweird.f32 %v836
    %vm843 = vmor %vm841, %vm842
    %v844 = vsel %vm843, %v836, %v840
    %v845 = vand.u32 2147483647, %v835
    %vm846 = vcmp.eq.f32.partialorder %v845, 8.507059e+37
    %v847 = vand.u32 %v835, 2147483648
    %v848 = vor.u32 1.1754944e-38, %v847
    %v849 = vsel %vm846, %v848, %v844
    %v850 = vmul.f32 1.0, %v849
    %v851 = vtanh.pop %v831
    %v852 = vsel %vm164, %v850, %v851
    %853 = vrot.lane.b32.xlu0 %v852, 96
    %v854 = vpop.permute.xlu0 %853
    %855 = vrot.lane.b32.xlu0 %v852, 64
    %v856 = vpop.permute.xlu0 %855
    %857 = vrot.lane.b32.xlu0 %v852, 32
    %v858 = vpop.permute.xlu0 %857
    %v859 = vmul.f32 %v854, %v807
    %v860 = vmul.f32 %v852, %v858
    %v861 = vadd.f32 %v859, %v860
    %v862 = vtanh.pop %v861
    %v863 = vmul.f32 %v856, %v862
    %864 = vst [vmem:[%s3 + $0x8] sm:$0xff] %v863
    %865 = vmatpush.msra.mxu0 %v705
    %866 = vmatpush.msra.mxu0 %v704
    %867 = vmatpush.msra.mxu0 %v703
    %868 = vmatpush.msra.mxu0 %v702
    %869 = vmatpush.msra.mxu0 %v701
    %870 = vmatpush.msra.mxu0 %v700
    %871 = vmatpush.msra.mxu0 %v699
    %872 = vmatpush.msra.mxu0 %v698
    %873 = vmatpush.msra.mxu0 %v697
    %874 = vmatpush.msra.mxu0 %v696
    %875 = vmatpush.msra.mxu0 %v695
    %876 = vmatpush.msra.mxu0 %v694
    %877 = vmatpush.msra.mxu0 %v693
    %878 = vmatpush.msra.mxu0 %v692
    %879 = vmatpush.msra.mxu0 %v691
    %880 = vmatpush.msra.mxu0 %v690
    %881 = vmatmul.f32.gmra.mxu0 %v863
    %v882 = vpop.f32.mrf.mxu0
    %v883 = vadd.f32 0.0, %v882
    %884 = vdwg.mxu0
    %v885 = vadd.f32 %v740, %v883
    %v886 = vxor.u32 %v885, 2147483648
    %v887 = vmul.f32 %v886, 1.442695
    %v888 = vpow.pop %v887
    %v889 = vadd.f32 %v888, 1.0
    %v890 = vrcp.pop %v889
    %v891 = vmul.f32 %v889, %v890
    %v892 = vsub.f32 1.0, %v891
    %v893 = vmul.f32 %v890, %v892
    %v894 = vadd.f32 %v890, %v893
    %vm895 = vweird.f32 %v889
    %vm896 = vweird.f32 %v890
    %vm897 = vmor %vm895, %vm896
    %v898 = vsel %vm897, %v890, %v894
    %v899 = vand.u32 2147483647, %v889
    %vm900 = vcmp.eq.f32.partialorder %v899, 8.507059e+37
    %v901 = vand.u32 %v889, 2147483648
    %v902 = vor.u32 1.1754944e-38, %v901
    %v903 = vsel %vm900, %v902, %v898
    %v904 = vmul.f32 1.0, %v903
    %v905 = vtanh.pop %v885
    %v906 = vsel %vm164, %v904, %v905
    %907 = vrot.lane.b32.xlu0 %v906, 96
    %v908 = vpop.permute.xlu0 %907
    %909 = vrot.lane.b32.xlu0 %v906, 64
    %v910 = vpop.permute.xlu0 %909
    %911 = vrot.lane.b32.xlu0 %v906, 32
    %v912 = vpop.permute.xlu0 %911
    %v913 = vmul.f32 %v908, %v861
    %v914 = vmul.f32 %v906, %v912
    %v915 = vadd.f32 %v913, %v914
    %v916 = vtanh.pop %v915
    %v917 = vmul.f32 %v910, %v916
    %918 = vst [vmem:[%s3 + $0x10] sm:$0xff] %v917
    %919 = vmatpush.msra.mxu0 %v705
    %920 = vmatpush.msra.mxu0 %v704
    %921 = vmatpush.msra.mxu0 %v703
    %922 = vmatpush.msra.mxu0 %v702
    %923 = vmatpush.msra.mxu0 %v701
    %924 = vmatpush.msra.mxu0 %v700
    %925 = vmatpush.msra.mxu0 %v699
    %926 = vmatpush.msra.mxu0 %v698
    %927 = vmatpush.msra.mxu0 %v697
    %928 = vmatpush.msra.mxu0 %v696
    %929 = vmatpush.msra.mxu0 %v695
    %930 = vmatpush.msra.mxu0 %v694
    %931 = vmatpush.msra.mxu0 %v693
    %932 = vmatpush.msra.mxu0 %v692
    %933 = vmatpush.msra.mxu0 %v691
    %934 = vmatpush.msra.mxu0 %v690
    %935 = vmatmul.f32.gmra.mxu0 %v917
    %v936 = vpop.f32.mrf.mxu0
    %v937 = vadd.f32 0.0, %v936
    %938 = vdwg.mxu0
    %v939 = vadd.f32 %v743, %v937
    %v940 = vxor.u32 %v939, 2147483648
    %v941 = vmul.f32 %v940, 1.442695
    %v942 = vpow.pop %v941
    %v943 = vadd.f32 %v942, 1.0
    %v944 = vrcp.pop %v943
    %v945 = vmul.f32 %v943, %v944
    %v946 = vsub.f32 1.0, %v945
    %v947 = vmul.f32 %v944, %v946
    %v948 = vadd.f32 %v944, %v947
    %vm949 = vweird.f32 %v943
    %vm950 = vweird.f32 %v944
    %vm951 = vmor %vm949, %vm950
    %v952 = vsel %vm951, %v944, %v948
    %v953 = vand.u32 2147483647, %v943
    %vm954 = vcmp.eq.f32.partialorder %v953, 8.507059e+37
    %v955 = vand.u32 %v943, 2147483648
    %v956 = vor.u32 1.1754944e-38, %v955
    %v957 = vsel %vm954, %v956, %v952
    %v958 = vmul.f32 1.0, %v957
    %v959 = vtanh.pop %v939
    %v960 = vsel %vm164, %v958, %v959
    %961 = vrot.lane.b32.xlu0 %v960, 96
    %v962 = vpop.permute.xlu0 %961
    %963 = vrot.lane.b32.xlu0 %v960, 64
    %v964 = vpop.permute.xlu0 %963
    %965 = vrot.lane.b32.xlu0 %v960, 32
    %v966 = vpop.permute.xlu0 %965
    %v967 = vmul.f32 %v962, %v915
    %v968 = vmul.f32 %v960, %v966
    %v969 = vadd.f32 %v967, %v968
    %v970 = vtanh.pop %v969
    %v971 = vmul.f32 %v964, %v970
    %972 = vst [vmem:[%s3 + $0x18] sm:$0xff] %v971
    %973 = vmatpush.msra.mxu0 %v705
    %974 = vmatpush.msra.mxu0 %v704
    %975 = vmatpush.msra.mxu0 %v703
    %976 = vmatpush.msra.mxu0 %v702
    %977 = vmatpush.msra.mxu0 %v701
    %978 = vmatpush.msra.mxu0 %v700
    %979 = vmatpush.msra.mxu0 %v699
    %980 = vmatpush.msra.mxu0 %v698
    %981 = vmatpush.msra.mxu0 %v697
    %982 = vmatpush.msra.mxu0 %v696
    %983 = vmatpush.msra.mxu0 %v695
    %984 = vmatpush.msra.mxu0 %v694
    %985 = vmatpush.msra.mxu0 %v693
    %986 = vmatpush.msra.mxu0 %v692
    %987 = vmatpush.msra.mxu0 %v691
    %988 = vmatpush.msra.mxu0 %v690
    %989 = vmatmul.f32.gmra.mxu0 %v971
    %v990 = vpop.f32.mrf.mxu0
    %v991 = vadd.f32 0.0, %v990
    %992 = vdwg.mxu0
    %v993 = vadd.f32 %v746, %v991
    %v994 = vxor.u32 %v993, 2147483648
    %v995 = vmul.f32 %v994, 1.442695
    %v996 = vpow.pop %v995
    %v997 = vadd.f32 %v996, 1.0
    %v998 = vrcp.pop %v997
    %v999 = vmul.f32 %v997, %v998
    %v1000 = vsub.f32 1.0, %v999
    %v1001 = vmul.f32 %v998, %v1000
    %v1002 = vadd.f32 %v998, %v1001
    %vm1003 = vweird.f32 %v997
    %vm1004 = vweird.f32 %v998
    %vm1005 = vmor %vm1003, %vm1004
    %v1006 = vsel %vm1005, %v998, %v1002
    %v1007 = vand.u32 2147483647, %v997
    %vm1008 = vcmp.eq.f32.partialorder %v1007, 8.507059e+37
    %v1009 = vand.u32 %v997, 2147483648
    %v1010 = vor.u32 1.1754944e-38, %v1009
    %v1011 = vsel %vm1008, %v1010, %v1006
    %v1012 = vmul.f32 1.0, %v1011
    %v1013 = vtanh.pop %v993
    %v1014 = vsel %vm164, %v1012, %v1013
    %1015 = vrot.lane.b32.xlu0 %v1014, 96
    %v1016 = vpop.permute.xlu0 %1015
    %1017 = vrot.lane.b32.xlu0 %v1014, 64
    %v1018 = vpop.permute.xlu0 %1017
    %1019 = vrot.lane.b32.xlu0 %v1014, 32
    %v1020 = vpop.permute.xlu0 %1019
    %v1021 = vmul.f32 %v1016, %v969
    %v1022 = vmul.f32 %v1014, %v1020
    %v1023 = vadd.f32 %v1021, %v1022
    %v1024 = vtanh.pop %v1023
    %v1025 = vmul.f32 %v1018, %v1024
    %1026 = vst [vmem:[%s3 + $0x20] sm:$0xff] %v1025
    %1027 = vmatpush.msra.mxu0 %v705
    %1028 = vmatpush.msra.mxu0 %v704
    %1029 = vmatpush.msra.mxu0 %v703
    %1030 = vmatpush.msra.mxu0 %v702
    %1031 = vmatpush.msra.mxu0 %v701
    %1032 = vmatpush.msra.mxu0 %v700
    %1033 = vmatpush.msra.mxu0 %v699
    %1034 = vmatpush.msra.mxu0 %v698
    %1035 = vmatpush.msra.mxu0 %v697
    %1036 = vmatpush.msra.mxu0 %v696
    %1037 = vmatpush.msra.mxu0 %v695
    %1038 = vmatpush.msra.mxu0 %v694
    %1039 = vmatpush.msra.mxu0 %v693
    %1040 = vmatpush.msra.mxu0 %v692
    %1041 = vmatpush.msra.mxu0 %v691
    %1042 = vmatpush.msra.mxu0 %v690
    %1043 = vmatmul.f32.gmra.mxu0 %v1025
    %v1044 = vpop.f32.mrf.mxu0
    %v1045 = vadd.f32 0.0, %v1044
    %1046 = vdwg.mxu0
    %v1047 = vadd.f32 %v749, %v1045
    %v1048 = vxor.u32 %v1047, 2147483648
    %v1049 = vmul.f32 %v1048, 1.442695
    %v1050 = vpow.pop %v1049
    %v1051 = vadd.f32 %v1050, 1.0
    %v1052 = vrcp.pop %v1051
    %v1053 = vmul.f32 %v1051, %v1052
    %v1054 = vsub.f32 1.0, %v1053
    %v1055 = vmul.f32 %v1052, %v1054
    %v1056 = vadd.f32 %v1052, %v1055
    %vm1057 = vweird.f32 %v1051
    %vm1058 = vweird.f32 %v1052
    %vm1059 = vmor %vm1057, %vm1058
    %v1060 = vsel %vm1059, %v1052, %v1056
    %v1061 = vand.u32 2147483647, %v1051
    %vm1062 = vcmp.eq.f32.partialorder %v1061, 8.507059e+37
    %v1063 = vand.u32 %v1051, 2147483648
    %v1064 = vor.u32 1.1754944e-38, %v1063
    %v1065 = vsel %vm1062, %v1064, %v1060
    %v1066 = vmul.f32 1.0, %v1065
    %v1067 = vtanh.pop %v1047
    %v1068 = vsel %vm164, %v1066, %v1067
    %1069 = vrot.lane.b32.xlu0 %v1068, 96
    %v1070 = vpop.permute.xlu0 %1069
    %1071 = vrot.lane.b32.xlu0 %v1068, 64
    %v1072 = vpop.permute.xlu0 %1071
    %1073 = vrot.lane.b32.xlu0 %v1068, 32
    %v1074 = vpop.permute.xlu0 %1073
    %v1075 = vmul.f32 %v1070, %v1023
    %v1076 = vmul.f32 %v1068, %v1074
    %v1077 = vadd.f32 %v1075, %v1076
    %v1078 = vtanh.pop %v1077
    %v1079 = vmul.f32 %v1072, %v1078
    %1080 = vst [vmem:[%s3 + $0x28] sm:$0xff] %v1079
    %1081 = vmatpush.msra.mxu0 %v705
    %1082 = vmatpush.msra.mxu0 %v704
    %1083 = vmatpush.msra.mxu0 %v703
    %1084 = vmatpush.msra.mxu0 %v702
    %1085 = vmatpush.msra.mxu0 %v701
    %1086 = vmatpush.msra.mxu0 %v700
    %1087 = vmatpush.msra.mxu0 %v699
    %1088 = vmatpush.msra.mxu0 %v698
    %1089 = vmatpush.msra.mxu0 %v697
    %1090 = vmatpush.msra.mxu0 %v696
    %1091 = vmatpush.msra.mxu0 %v695
    %1092 = vmatpush.msra.mxu0 %v694
    %1093 = vmatpush.msra.mxu0 %v693
    %1094 = vmatpush.msra.mxu0 %v692
    %1095 = vmatpush.msra.mxu0 %v691
    %1096 = vmatpush.msra.mxu0 %v690
    %1097 = vmatmul.f32.gmra.mxu0 %v1079
    %v1098 = vpop.f32.mrf.mxu0
    %v1099 = vadd.f32 0.0, %v1098
    %1100 = vdwg.mxu0
    %v1101 = vadd.f32 %v752, %v1099
    %v1102 = vxor.u32 %v1101, 2147483648
    %v1103 = vmul.f32 %v1102, 1.442695
    %v1104 = vpow.pop %v1103
    %v1105 = vadd.f32 %v1104, 1.0
    %v1106 = vrcp.pop %v1105
    %v1107 = vmul.f32 %v1105, %v1106
    %v1108 = vsub.f32 1.0, %v1107
    %v1109 = vmul.f32 %v1106, %v1108
    %v1110 = vadd.f32 %v1106, %v1109
    %vm1111 = vweird.f32 %v1105
    %vm1112 = vweird.f32 %v1106
    %vm1113 = vmor %vm1111, %vm1112
    %v1114 = vsel %vm1113, %v1106, %v1110
    %v1115 = vand.u32 2147483647, %v1105
    %vm1116 = vcmp.eq.f32.partialorder %v1115, 8.507059e+37
    %v1117 = vand.u32 %v1105, 2147483648
    %v1118 = vor.u32 1.1754944e-38, %v1117
    %v1119 = vsel %vm1116, %v1118, %v1114
    %v1120 = vmul.f32 1.0, %v1119
    %v1121 = vtanh.pop %v1101
    %v1122 = vsel %vm164, %v1120, %v1121
    %1123 = vrot.lane.b32.xlu0 %v1122, 96
    %v1124 = vpop.permute.xlu0 %1123
    %1125 = vrot.lane.b32.xlu0 %v1122, 64
    %v1126 = vpop.permute.xlu0 %1125
    %1127 = vrot.lane.b32.xlu0 %v1122, 32
    %v1128 = vpop.permute.xlu0 %1127
    %v1129 = vmul.f32 %v1124, %v1077
    %v1130 = vmul.f32 %v1122, %v1128
    %v1131 = vadd.f32 %v1129, %v1130
    %v1132 = vtanh.pop %v1131
    %v1133 = vmul.f32 %v1126, %v1132
    %1134 = vst [vmem:[%s3 + $0x30] sm:$0xff] %v1133
    %1135 = vmatpush.msra.mxu0 %v705
    %1136 = vmatpush.msra.mxu0 %v704
    %1137 = vmatpush.msra.mxu0 %v703
    %1138 = vmatpush.msra.mxu0 %v702
    %1139 = vmatpush.msra.mxu0 %v701
    %1140 = vmatpush.msra.mxu0 %v700
    %1141 = vmatpush.msra.mxu0 %v699
    %1142 = vmatpush.msra.mxu0 %v698
    %1143 = vmatpush.msra.mxu0 %v697
    %1144 = vmatpush.msra.mxu0 %v696
    %1145 = vmatpush.msra.mxu0 %v695
    %1146 = vmatpush.msra.mxu0 %v694
    %1147 = vmatpush.msra.mxu0 %v693
    %1148 = vmatpush.msra.mxu0 %v692
    %1149 = vmatpush.msra.mxu0 %v691
    %1150 = vmatpush.msra.mxu0 %v690
    %1151 = vmatmul.f32.gmra.mxu0 %v1133
    %v1152 = vpop.f32.mrf.mxu0
    %v1153 = vadd.f32 0.0, %v1152
    %1154 = vdwg.mxu0
    %v1155 = vadd.f32 %v755, %v1153
    %v1156 = vxor.u32 %v1155, 2147483648
    %v1157 = vmul.f32 %v1156, 1.442695
    %v1158 = vpow.pop %v1157
    %v1159 = vadd.f32 %v1158, 1.0
    %v1160 = vrcp.pop %v1159
    %v1161 = vmul.f32 %v1159, %v1160
    %v1162 = vsub.f32 1.0, %v1161
    %v1163 = vmul.f32 %v1160, %v1162
    %v1164 = vadd.f32 %v1160, %v1163
    %vm1165 = vweird.f32 %v1159
    %vm1166 = vweird.f32 %v1160
    %vm1167 = vmor %vm1165, %vm1166
    %v1168 = vsel %vm1167, %v1160, %v1164
    %v1169 = vand.u32 2147483647, %v1159
    %vm1170 = vcmp.eq.f32.partialorder %v1169, 8.507059e+37
    %v1171 = vand.u32 %v1159, 2147483648
    %v1172 = vor.u32 1.1754944e-38, %v1171
    %v1173 = vsel %vm1170, %v1172, %v1168
    %v1174 = vmul.f32 1.0, %v1173
    %v1175 = vtanh.pop %v1155
    %v1176 = vsel %vm164, %v1174, %v1175
    %1177 = vrot.lane.b32.xlu0 %v1176, 96
    %v1178 = vpop.permute.xlu0 %1177
    %1179 = vrot.lane.b32.xlu0 %v1176, 64
    %v1180 = vpop.permute.xlu0 %1179
    %1181 = vrot.lane.b32.xlu0 %v1176, 32
    %v1182 = vpop.permute.xlu0 %1181
    %v1183 = vmul.f32 %v1178, %v1131
    %v1184 = vmul.f32 %v1176, %v1182
    %v1185 = vadd.f32 %v1183, %v1184
    %v1186 = vtanh.pop %v1185
    %v1187 = vmul.f32 %v1180, %v1186
    %1188 = vst [vmem:[%s3 + $0x38] sm:$0xff] %v1187
    %1189 = vst [vmem:[%s4 + $0x8] sm:$0xff] %v1187
    %1190 = vst [vmem:[%s5 + $0x8] sm:$0xff] %v1185
    // Predicated region
    $region18: #{encoder_forward.1} parent=1 // pred_check
      _
    $region19: #{encoder_forward.1} parent=1 // pred_check_branch
      %1192 = sbr.rel (0) target = $region21
    $region20: #{encoder_forward.1} parent=1 // pred_region
      _
    $region21: #{encoder_forward.1} parent=1 // pred_fallthru
      _
    // Predicated region
    $region22: #{encoder_forward.1} parent=1 // pred_check
      _
    $region23: #{encoder_forward.1} parent=1 // pred_check_branch
      %1194 = sbr.rel (0) target = $region25
    $region24: #{encoder_forward.1} parent=1 // pred_region
      _
    $region25: #{encoder_forward.1} parent=1 // pred_fallthru
      _
    // Predicated region
    $region26: #{encoder_forward.1} parent=1 // pred_check
      _
    $region27: #{encoder_forward.1} parent=1 // pred_check_branch
      %1196 = sbr.rel (0) target = $region29
    $region28: #{encoder_forward.1} parent=1 // pred_region
      _
    $region29: #{encoder_forward.1} parent=1 // pred_fallthru
      _
    // Predicated region
    $region30: #{encoder_forward.1} parent=1 // pred_check
      _
    $region31: #{encoder_forward.1} parent=1 // pred_check_branch
      %1198 = sbr.rel (0) target = $region33
    $region32: #{encoder_forward.1} parent=1 // pred_region
      _
    $region33: #{encoder_forward.1} parent=1 // pred_fallthru
      _
    // Predicated region
    $region34: #{encoder_forward.1} parent=1 // pred_check
      _
    $region35: #{encoder_forward.1} parent=1 // pred_check_branch
      %1200 = sbr.rel (0) target = $region37
    $region36: #{encoder_forward.1} parent=1 // pred_region
      _
    $region37: #{encoder_forward.1} parent=1 // pred_fallthru
      _
    // Predicated region
    $region38: #{encoder_forward.1} parent=1 // pred_check
      _
    $region39: #{encoder_forward.1} parent=1 // pred_check_branch
      %1202 = sbr.rel (0) target = $region41
    $region40: #{encoder_forward.1} parent=1 // pred_region
      _
    $region41: #{encoder_forward.1} parent=1 // pred_fallthru
      _
    %1203 = vsyncpa [#allocation3], 1

</llo_original>
